<compile_context>
chip_gen: v7x
topology: tpu7x:2x2x1
jax: 0.10.0
libtpu: 0.0.40
codegen_flags: <defaults>
</compile_context>

<pallas_src>
import jax
import jax.numpy as jnp
from jax.experimental import pallas as pl
from jax.experimental.pallas import tpu as pltpu

EPS_GEN = 1e-7      # GENConv message eps
EPS_LN = 1e-5       # torch.nn.LayerNorm default eps
NUM_LAYERS = 3
LANE = 128


def _layernorm(x, gamma, beta):
    mu = jnp.mean(x, axis=-1, keepdims=True)
    var = jnp.mean(jnp.square(x - mu), axis=-1, keepdims=True)
    return (x - mu) * jax.lax.rsqrt(var + EPS_LN) * gamma + beta


def _fused_kernel(xe_ref, S_ref, D_ref, P_ref, w1_ref, w2_ref, wfb_ref, pb_ref, out_ref):
    # Shapes (all static): xe=[N+E,C] f32, S=[E,N] bf16, D=[N,E] bf16, P=[B,N] f32,
    # w1=[L,C,2C] f32, w2=[L,2C,C] f32, wfb=[C+1,128] f32, pb=[6L,2C] f32, out=[B,128] f32.
    N = D_ref.shape[0]
    C = w2_ref.shape[2]
    L = w1_ref.shape[0]

    xe = xe_ref[...]
    h = xe[:N]                      # [N, C] node features, stay in VMEM/vregs across all layers
    e = xe[N:]                      # [E, C] edge embeddings
    S = S_ref[...]                  # [E, N] bf16 one-hot gather (src)
    D = D_ref[...]                  # [N, E] bf16 one-hot scatter-sum (dst)
    pb = pb_ref[...]                # [6L, 2C] packed small params

    for l in range(L):
        base = 6 * l
        b1 = pb[base + 2:base + 3, :]          # [1, 2C]
        mg = pb[base + 3:base + 4, :]          # [1, 2C]
        mb = pb[base + 4:base + 5, :]          # [1, 2C]
        b2 = pb[base + 5:base + 6, :C]         # [1, C]

        if l == 0:
            x = h
        else:
            # res+ : norms[l-1] -> ReLU -> (dropout p=0 -> identity) before the conv
            pbase = 6 * (l - 1)
            x = jnp.maximum(
                _layernorm(h, pb[pbase:pbase + 1, :C], pb[pbase + 1:pbase + 2, :C]), 0.0)

        # GENConv message: relu(x_src + edge_emb) + eps   (x_src gathered via one-hot matmul)
        x_src = jnp.dot(S, x.astype(S.dtype), preferred_element_type=jnp.float32)   # [E, C]
        msg = jnp.maximum(x_src + e, 0.0) + EPS_GEN

        # softmax aggregation over incoming edges of each destination (t=1.0).
        # Per-channel shift (constant over edges) cancels exactly in num/den; sublane reduce only.
        w = jnp.exp(msg - jnp.max(msg, axis=0, keepdims=True))                       # [E, C]
        # Fused num/den: one [N,E]x[E,2C] bf16 matmul with f32 accumulation.
        packed = jnp.concatenate([w * msg, w], axis=1).astype(D.dtype)               # [E, 2C]
        agg = jnp.dot(D, packed, preferred_element_type=jnp.float32)                 # [N, 2C]
        num, den = agg[:, :C], agg[:, C:]
        # isolated nodes: den == 0 -> m == 0 (matches scatter semantics); safe denom avoids inf*0
        has_in = den > 0.0
        m = jnp.where(has_in,
                      num * pl.reciprocal(jnp.where(has_in, den, 1.0), approx=True),
                      0.0)

        hagg = x + m

        # GENConv MLP (mlp_layers=2, last_lin): Linear -> LayerNorm -> ReLU -> Linear
        z = jnp.dot(hagg, w1_ref[l], preferred_element_type=jnp.float32) + b1
        z = jnp.maximum(_layernorm(z, mg, mb), 0.0)
        z = jnp.dot(z, w2_ref[l], preferred_element_type=jnp.float32) + b2

        h = z + h if l > 0 else z              # res+ residual (layer 0 has none)

    # norms[L-1] -> (dropout p=0) -> mean pool -> graph_pred_linear (lane-padded to 128)
    fb = 6 * (L - 1)
    hn = _layernorm(h, pb[fb:fb + 1, :C], pb[fb + 1:fb + 2, :C])
    hg = jnp.dot(P_ref[...], hn, preferred_element_type=jnp.float32)                 # [B, C]
    wfb = wfb_ref[...]                                                               # [C+1, 128]
    out_ref[...] = jnp.dot(hg, wfb[:C], preferred_element_type=jnp.float32) + wfb[C:C + 1]


def _pack_params(params):
    """Pack all small per-layer params into one [6L, 2C] slab and (wf, bf) into [C+1, 128]."""
    L, _, C2 = params["b1"].shape
    C = C2 // 2
    ncls = params["wf"].shape[1]

    def pad_c(v):
        v = v.reshape(1, -1)
        return jnp.pad(v, ((0, 0), (0, C2 - v.shape[1])))

    rows = []
    for l in range(L):
        rows.append(pad_c(params["ng"][l]))                     # row 6l+0
        rows.append(pad_c(params["nb"][l]))                     # row 6l+1
        rows.append(params["b1"][l].reshape(1, C2))             # row 6l+2
        rows.append(params["mg"][l].reshape(1, C2))             # row 6l+3
        rows.append(params["mb"][l].reshape(1, C2))             # row 6l+4
        rows.append(pad_c(params["b2"][l]))                     # row 6l+5
    pslab = jnp.concatenate(rows, axis=0)                       # [6L, 2C]

    wf_pad = jnp.pad(params["wf"], ((0, 0), (0, LANE - ncls)))  # [C, 128]
    bf_pad = jnp.pad(params["bf"], ((0, 0), (0, LANE - ncls)))  # [1, 128]
    wfb = jnp.concatenate([wf_pad, bf_pad], axis=0)             # [C+1, 128]
    return pslab, wfb


def deeper_gcn_forward(h0, edge_emb, S, D, P, params):
    B = P.shape[0]
    ncls = params["wf"].shape[1]
    pslab, wfb = _pack_params(params)                 # TODO(synk): pre-pack once outside hot loop
    xe = jnp.concatenate([h0, edge_emb], axis=0)      # single [N+E, C] slab -> one DMA

    args = (xe, S, D, P, params["w1"], params["w2"], wfb, pslab)
    out_pad = pl.pallas_call(
        _fused_kernel,
        out_shape=jax.ShapeDtypeStruct((B, LANE), jnp.float32),
        in_specs=[pl.BlockSpec(memory_space=pltpu.MemorySpace.VMEM) for _ in args],
        out_specs=pl.BlockSpec(memory_space=pltpu.MemorySpace.VMEM),
    )(*args)
    return out_pad[:, :ncls]


def _reference(h0, edge_emb, edge_index, batch, params, B):
    """Pure-JAX f32 reference of the res+ DeeperGCN forward (for validation)."""
    src, dst = edge_index[0], edge_index[1]
    N, C = h0.shape

    def ln(x, g, b):
        mu = x.mean(-1, keepdims=True)
        var = ((x - mu) ** 2).mean(-1, keepdims=True)
        return (x - mu) / jnp.sqrt(var + EPS_LN) * g + b

    def genconv(x, l):
        msg = jnp.maximum(x[src] + edge_emb, 0.0) + EPS_GEN
        seg_max = jnp.full((N, C), -jnp.inf, jnp.float32).at[dst].max(msg)
        w = jnp.exp(msg - seg_max[dst])
        den = jnp.zeros((N, C), jnp.float32).at[dst].add(w)
        num = jnp.zeros((N, C), jnp.float32).at[dst].add(w * msg)
        m = jnp.where(den > 0, num / jnp.where(den > 0, den, 1.0), 0.0)
        z = (x + m) @ params["w1"][l] + params["b1"][l]
        z = jnp.maximum(ln(z, params["mg"][l], params["mb"][l]), 0.0)
        return z @ params["w2"][l] + params["b2"][l]

    h = genconv(h0, 0)
    for l in range(1, NUM_LAYERS):
        x = jnp.maximum(ln(h, params["ng"][l - 1], params["nb"][l - 1]), 0.0)
        h = genconv(x, l) + h
    hn = ln(h, params["ng"][NUM_LAYERS - 1], params["nb"][NUM_LAYERS - 1])
    oneb = jax.nn.one_hot(batch, B, dtype=jnp.float32)
    hg = (oneb.T @ hn) / jnp.maximum(oneb.sum(0), 1.0)[:, None]
    return hg @ params["wf"] + params["bf"]


if __name__ == "__main__":
    N, E, B, C, NCLS = 32, 64, 2, 32, 8
    atom_vocab = [5, 6, 7]   # synthetic AtomEncoder feature cardinalities
    bond_vocab = [4, 3, 2]   # synthetic BondEncoder feature cardinalities

    key = jax.random.PRNGKey(0)
    keys = iter(jax.random.split(key, 64))
    nxt = lambda: next(keys)

    # --- deterministic parameters ---------------------------------------------------------
    atom_tabs = [0.1 * jax.random.normal(nxt(), (v, C), jnp.float32) for v in atom_vocab]
    bond_tabs = [0.1 * jax.random.normal(nxt(), (v, C), jnp.float32) for v in bond_vocab]

    def lin_init(k, fin, fout):
        bound = 1.0 / (fin ** 0.5)
        kw, kb = jax.random.split(k)
        W = jax.random.uniform(kw, (fin, fout), jnp.float32, -bound, bound)
        b = jax.random.uniform(kb, (1, fout), jnp.float32, -bound, bound)
        return W, b

    w1s, b1s, w2s, b2s = [], [], [], []
    for _ in range(NUM_LAYERS):
        W1, b1 = lin_init(nxt(), C, 2 * C)
        W2, b2 = lin_init(nxt(), 2 * C, C)
        w1s.append(W1); b1s.append(b1); w2s.append(W2); b2s.append(b2)

    params = dict(
        ng=jnp.ones((NUM_LAYERS, 1, C), jnp.float32),          # norms[l] gamma (default init)
        nb=jnp.zeros((NUM_LAYERS, 1, C), jnp.float32),         # norms[l] beta
        w1=jnp.stack(w1s), b1=jnp.stack(b1s),                  # [L, C, 2C], [L, 1, 2C]
        mg=jnp.ones((NUM_LAYERS, 1, 2 * C), jnp.float32),      # MLP LayerNorm gamma
        mb=jnp.zeros((NUM_LAYERS, 1, 2 * C), jnp.float32),     # MLP LayerNorm beta
        w2=jnp.stack(w2s), b2=jnp.stack(b2s),                  # [L, 2C, C], [L, 1, C]
    )
    Wf, bf = lin_init(nxt(), C, NCLS)
    params["wf"] = Wf
    params["bf"] = bf

    # --- deterministic synthetic graph batch (2 graphs of 16 nodes) -------------------------
    batch = jnp.concatenate([jnp.zeros(N // 2, jnp.int32),
                             jnp.ones(N - N // 2, jnp.int32)])
    src0 = jax.random.randint(nxt(), (E // 2,), 0, N // 2)
    dst0 = jax.random.randint(nxt(), (E // 2,), 0, N // 2)
    src1 = jax.random.randint(nxt(), (E // 2,), N // 2, N)
    dst1 = jax.random.randint(nxt(), (E // 2,), N // 2, N)
    edge_index = jnp.stack([jnp.concatenate([src0, src1]),
                            jnp.concatenate([dst0, dst1])]).astype(jnp.int32)   # [2, E]
    x_feat = jnp.stack([jax.random.randint(nxt(), (N,), 0, v) for v in atom_vocab], axis=1)
    e_feat = jnp.stack([jax.random.randint(nxt(), (E,), 0, v) for v in bond_vocab], axis=1)

    # --- JAX glue: encoders and gather/scatter/pool matrices --------------------------------
    h0 = sum(atom_tabs[f][x_feat[:, f]] for f in range(len(atom_vocab)))          # AtomEncoder
    edge_emb = sum(bond_tabs[f][e_feat[:, f]] for f in range(len(bond_vocab)))    # BondEncoder

    # 0/1 are exactly representable in bf16 -> no precision loss for the gather/scatter matrices
    S = jax.nn.one_hot(edge_index[0], N, dtype=jnp.bfloat16)    # [E, N] gather x_j = x[src]
    D = jax.nn.one_hot(edge_index[1], N, dtype=jnp.bfloat16).T  # [N, E] scatter-sum onto dst
    onehot_b = jax.nn.one_hot(batch, B, dtype=jnp.float32)      # [N, B]
    counts = jnp.maximum(onehot_b.sum(axis=0), 1.0)             # nodes per graph
    P = onehot_b.T / counts[:, None]                            # [B, N] mean pool

    # --- fused forward pass (block == 'res+') ------------------------------------------------
    out = deeper_gcn_forward(h0, edge_emb, S, D, P, params)     # [B, NCLS]
    out = jax.block_until_ready(out)

    assert out.shape == (B, NCLS) and out.dtype == jnp.float32
    assert bool(jnp.all(jnp.isfinite(out)))

    # Loose tolerance: kernel runs bf16 MXU gather/scatter + approx reciprocal by design.
    ref = _reference(h0, edge_emb, edge_index, batch, params, B)
    assert bool(jnp.allclose(out, ref, atol=1e-1, rtol=1e-1))

    print("KERNEL_OK")
</pallas_src>

<mosaic_0001>
module attributes {stable_mosaic.version = 11 : i64} {
  func.func @_fused_kernel(%arg0: memref<96x32xf32, #tpu.memory_space<vmem>>, %arg1: memref<64x32xbf16, #tpu.memory_space<vmem>>, %arg2: memref<32x64xbf16, #tpu.memory_space<vmem>>, %arg3: memref<2x32xf32, #tpu.memory_space<vmem>>, %arg4: memref<3x32x64xf32, #tpu.memory_space<vmem>>, %arg5: memref<3x64x32xf32, #tpu.memory_space<vmem>>, %arg6: memref<33x128xf32, #tpu.memory_space<vmem>>, %arg7: memref<18x64xf32, #tpu.memory_space<vmem>>, %arg8: memref<2x128xf32, #tpu.memory_space<vmem>>) attributes {dimension_semantics = [], scalar_prefetch = 0 : i64, scratch_operands = 0 : i64, tpu.core_type = #tpu.core_type<tc>} {
    %c0 = arith.constant 0 : index
    %c0_0 = arith.constant 0 : index
    %0 = vector.load %arg0[%c0, %c0_0] : memref<96x32xf32, #tpu.memory_space<vmem>>, vector<96x32xf32>
    %1 = vector.extract_strided_slice %0 {offsets = [0, 0], sizes = [32, 32], strides = [1, 1]} : vector<96x32xf32> to vector<32x32xf32>
    %2 = vector.extract_strided_slice %0 {offsets = [32, 0], sizes = [64, 32], strides = [1, 1]} : vector<96x32xf32> to vector<64x32xf32>
    %c0_1 = arith.constant 0 : index
    %c0_2 = arith.constant 0 : index
    %3 = vector.load %arg1[%c0_1, %c0_2] : memref<64x32xbf16, #tpu.memory_space<vmem>>, vector<64x32xbf16>
    %c0_3 = arith.constant 0 : index
    %c0_4 = arith.constant 0 : index
    %4 = vector.load %arg2[%c0_3, %c0_4] : memref<32x64xbf16, #tpu.memory_space<vmem>>, vector<32x64xbf16>
    %c0_5 = arith.constant 0 : index
    %c0_6 = arith.constant 0 : index
    %5 = vector.load %arg7[%c0_5, %c0_6] : memref<18x64xf32, #tpu.memory_space<vmem>>, vector<18x64xf32>
    %6 = vector.extract_strided_slice %5 {offsets = [2, 0], sizes = [1, 64], strides = [1, 1]} : vector<18x64xf32> to vector<1x64xf32>
    %7 = vector.extract_strided_slice %5 {offsets = [3, 0], sizes = [1, 64], strides = [1, 1]} : vector<18x64xf32> to vector<1x64xf32>
    %8 = vector.extract_strided_slice %5 {offsets = [4, 0], sizes = [1, 64], strides = [1, 1]} : vector<18x64xf32> to vector<1x64xf32>
    %9 = vector.extract_strided_slice %5 {offsets = [5, 0], sizes = [1, 32], strides = [1, 1]} : vector<18x64xf32> to vector<1x32xf32>
    %10 = arith.truncf %1 : vector<32x32xf32> to vector<32x32xbf16>
    %cst = arith.constant dense<0.000000e+00> : vector<64x32xf32>
    %11 = tpu.matmul %3, %10, %cst {dimension_numbers = #tpu.dot_dimension_numbers<[1], [0], [0], [1], [0, 0, 1, 1], [], []>} : vector<64x32xbf16>, vector<32x32xbf16>, vector<64x32xf32> -> vector<64x32xf32>
    %12 = arith.addf %11, %2 : vector<64x32xf32>
    %cst_7 = arith.constant 0.000000e+00 : f32
    %13 = vector.broadcast %cst_7 : f32 to vector<64x32xf32>
    %14 = arith.maximumf %12, %13 : vector<64x32xf32>
    %cst_8 = arith.constant 1.000000e-07 : f32
    %15 = vector.broadcast %cst_8 : f32 to vector<64x32xf32>
    %16 = arith.addf %14, %15 : vector<64x32xf32>
    %cst_9 = arith.constant dense<0xFF800000> : vector<32xf32>
    %17 = vector.multi_reduction <maximumf>, %16, %cst_9 [0] : vector<64x32xf32> to vector<32xf32>
    %18 = vector.shape_cast %17 : vector<32xf32> to vector<1x32xf32>
    %19 = vector.broadcast %18 : vector<1x32xf32> to vector<64x32xf32>
    %20 = arith.subf %16, %19 : vector<64x32xf32>
    %21 = math.exp %20 : vector<64x32xf32>
    %22 = arith.mulf %21, %16 : vector<64x32xf32>
    %23 = tpu.concatenate %22, %21 in 1 : vector<64x32xf32>, vector<64x32xf32> -> vector<64x64xf32>
    %24 = arith.truncf %23 : vector<64x64xf32> to vector<64x64xbf16>
    %cst_10 = arith.constant dense<0.000000e+00> : vector<32x64xf32>
    %25 = tpu.matmul %4, %24, %cst_10 {dimension_numbers = #tpu.dot_dimension_numbers<[1], [0], [0], [1], [0, 0, 1, 1], [], []>} : vector<32x64xbf16>, vector<64x64xbf16>, vector<32x64xf32> -> vector<32x64xf32>
    %26 = vector.extract_strided_slice %25 {offsets = [0, 0], sizes = [32, 32], strides = [1, 1]} : vector<32x64xf32> to vector<32x32xf32>
    %27 = vector.extract_strided_slice %25 {offsets = [0, 32], sizes = [32, 32], strides = [1, 1]} : vector<32x64xf32> to vector<32x32xf32>
    %cst_11 = arith.constant 0.000000e+00 : f32
    %28 = vector.broadcast %cst_11 : f32 to vector<32x32xf32>
    %29 = arith.cmpf ogt, %27, %28 : vector<32x32xf32>
    %cst_12 = arith.constant 1.000000e+00 : f32
    %30 = vector.broadcast %cst_12 : f32 to vector<32x32xf32>
    %31 = arith.select %29, %27, %30 : vector<32x32xi1>, vector<32x32xf32>
    %32 = tpu.reciprocal %31 {approx = true} : vector<32x32xf32> -> vector<32x32xf32>
    %33 = arith.mulf %26, %32 : vector<32x32xf32>
    %cst_13 = arith.constant 0.000000e+00 : f32
    %34 = vector.broadcast %cst_13 : f32 to vector<32x32xf32>
    %35 = arith.select %29, %33, %34 : vector<32x32xi1>, vector<32x32xf32>
    %36 = arith.addf %1, %35 : vector<32x32xf32>
    %c0_14 = arith.constant 0 : index
    %c0_15 = arith.constant 0 : index
    %c0_16 = arith.constant 0 : index
    %37 = vector.load %arg4[%c0_14, %c0_15, %c0_16] : memref<3x32x64xf32, #tpu.memory_space<vmem>>, vector<1x32x64xf32>
    %38 = vector.shape_cast %37 : vector<1x32x64xf32> to vector<32x64xf32>
    %cst_17 = arith.constant dense<0.000000e+00> : vector<32x64xf32>
    %39 = tpu.matmul %36, %38, %cst_17 {dimension_numbers = #tpu.dot_dimension_numbers<[1], [0], [0], [1], [0, 0, 1, 1], [], []>} : vector<32x32xf32>, vector<32x64xf32>, vector<32x64xf32> -> vector<32x64xf32>
    %40 = vector.broadcast %6 : vector<1x64xf32> to vector<32x64xf32>
    %41 = arith.addf %39, %40 : vector<32x64xf32>
    %cst_18 = arith.constant dense<0.000000e+00> : vector<32xf32>
    %42 = vector.multi_reduction <add>, %41, %cst_18 [1] : vector<32x64xf32> to vector<32xf32>
    %43 = vector.shape_cast %42 : vector<32xf32> to vector<32x1xf32>
    %cst_19 = arith.constant 6.400000e+01 : f32
    %44 = vector.broadcast %cst_19 : f32 to vector<32x1xf32>
    %45 = arith.divf %43, %44 : vector<32x1xf32>
    %46 = vector.broadcast %45 : vector<32x1xf32> to vector<32x64xf32>
    %47 = arith.subf %41, %46 : vector<32x64xf32>
    %48 = arith.mulf %47, %47 : vector<32x64xf32>
    %cst_20 = arith.constant dense<0.000000e+00> : vector<32xf32>
    %49 = vector.multi_reduction <add>, %48, %cst_20 [1] : vector<32x64xf32> to vector<32xf32>
    %50 = vector.shape_cast %49 : vector<32xf32> to vector<32x1xf32>
    %cst_21 = arith.constant 6.400000e+01 : f32
    %51 = vector.broadcast %cst_21 : f32 to vector<32x1xf32>
    %52 = arith.divf %50, %51 : vector<32x1xf32>
    %53 = vector.broadcast %45 : vector<32x1xf32> to vector<32x64xf32>
    %54 = arith.subf %41, %53 : vector<32x64xf32>
    %cst_22 = arith.constant 9.99999974E-6 : f32
    %55 = vector.broadcast %cst_22 : f32 to vector<32x1xf32>
    %56 = arith.addf %52, %55 : vector<32x1xf32>
    %57 = math.rsqrt %56 : vector<32x1xf32>
    %58 = vector.broadcast %57 : vector<32x1xf32> to vector<32x64xf32>
    %59 = arith.mulf %54, %58 : vector<32x64xf32>
    %60 = vector.broadcast %7 : vector<1x64xf32> to vector<32x64xf32>
    %61 = arith.mulf %59, %60 : vector<32x64xf32>
    %62 = vector.broadcast %8 : vector<1x64xf32> to vector<32x64xf32>
    %63 = arith.addf %61, %62 : vector<32x64xf32>
    %cst_23 = arith.constant 0.000000e+00 : f32
    %64 = vector.broadcast %cst_23 : f32 to vector<32x64xf32>
    %65 = arith.maximumf %63, %64 : vector<32x64xf32>
    %c0_24 = arith.constant 0 : index
    %c0_25 = arith.constant 0 : index
    %c0_26 = arith.constant 0 : index
    %66 = vector.load %arg5[%c0_24, %c0_25, %c0_26] : memref<3x64x32xf32, #tpu.memory_space<vmem>>, vector<1x64x32xf32>
    %67 = vector.shape_cast %66 : vector<1x64x32xf32> to vector<64x32xf32>
    %cst_27 = arith.constant dense<0.000000e+00> : vector<32x32xf32>
    %68 = tpu.matmul %65, %67, %cst_27 {dimension_numbers = #tpu.dot_dimension_numbers<[1], [0], [0], [1], [0, 0, 1, 1], [], []>} : vector<32x64xf32>, vector<64x32xf32>, vector<32x32xf32> -> vector<32x32xf32>
    %69 = vector.broadcast %9 : vector<1x32xf32> to vector<32x32xf32>
    %70 = arith.addf %68, %69 : vector<32x32xf32>
    %71 = vector.extract_strided_slice %5 {offsets = [8, 0], sizes = [1, 64], strides = [1, 1]} : vector<18x64xf32> to vector<1x64xf32>
    %72 = vector.extract_strided_slice %5 {offsets = [9, 0], sizes = [1, 64], strides = [1, 1]} : vector<18x64xf32> to vector<1x64xf32>
    %73 = vector.extract_strided_slice %5 {offsets = [10, 0], sizes = [1, 64], strides = [1, 1]} : vector<18x64xf32> to vector<1x64xf32>
    %74 = vector.extract_strided_slice %5 {offsets = [11, 0], sizes = [1, 32], strides = [1, 1]} : vector<18x64xf32> to vector<1x32xf32>
    %75 = vector.extract_strided_slice %5 {offsets = [0, 0], sizes = [1, 32], strides = [1, 1]} : vector<18x64xf32> to vector<1x32xf32>
    %76 = vector.extract_strided_slice %5 {offsets = [1, 0], sizes = [1, 32], strides = [1, 1]} : vector<18x64xf32> to vector<1x32xf32>
    %cst_28 = arith.constant dense<0.000000e+00> : vector<32xf32>
    %77 = vector.multi_reduction <add>, %70, %cst_28 [1] : vector<32x32xf32> to vector<32xf32>
    %78 = vector.shape_cast %77 : vector<32xf32> to vector<32x1xf32>
    %cst_29 = arith.constant 3.200000e+01 : f32
    %79 = vector.broadcast %cst_29 : f32 to vector<32x1xf32>
    %80 = arith.divf %78, %79 : vector<32x1xf32>
    %81 = vector.broadcast %80 : vector<32x1xf32> to vector<32x32xf32>
    %82 = arith.subf %70, %81 : vector<32x32xf32>
    %83 = arith.mulf %82, %82 : vector<32x32xf32>
    %cst_30 = arith.constant dense<0.000000e+00> : vector<32xf32>
    %84 = vector.multi_reduction <add>, %83, %cst_30 [1] : vector<32x32xf32> to vector<32xf32>
    %85 = vector.shape_cast %84 : vector<32xf32> to vector<32x1xf32>
    %cst_31 = arith.constant 3.200000e+01 : f32
    %86 = vector.broadcast %cst_31 : f32 to vector<32x1xf32>
    %87 = arith.divf %85, %86 : vector<32x1xf32>
    %88 = vector.broadcast %80 : vector<32x1xf32> to vector<32x32xf32>
    %89 = arith.subf %70, %88 : vector<32x32xf32>
    %cst_32 = arith.constant 9.99999974E-6 : f32
    %90 = vector.broadcast %cst_32 : f32 to vector<32x1xf32>
    %91 = arith.addf %87, %90 : vector<32x1xf32>
    %92 = math.rsqrt %91 : vector<32x1xf32>
    %93 = vector.broadcast %92 : vector<32x1xf32> to vector<32x32xf32>
    %94 = arith.mulf %89, %93 : vector<32x32xf32>
    %95 = vector.broadcast %75 : vector<1x32xf32> to vector<32x32xf32>
    %96 = arith.mulf %94, %95 : vector<32x32xf32>
    %97 = vector.broadcast %76 : vector<1x32xf32> to vector<32x32xf32>
    %98 = arith.addf %96, %97 : vector<32x32xf32>
    %cst_33 = arith.constant 0.000000e+00 : f32
    %99 = vector.broadcast %cst_33 : f32 to vector<32x32xf32>
    %100 = arith.maximumf %98, %99 : vector<32x32xf32>
    %101 = arith.truncf %100 : vector<32x32xf32> to vector<32x32xbf16>
    %cst_34 = arith.constant dense<0.000000e+00> : vector<64x32xf32>
    %102 = tpu.matmul %3, %101, %cst_34 {dimension_numbers = #tpu.dot_dimension_numbers<[1], [0], [0], [1], [0, 0, 1, 1], [], []>} : vector<64x32xbf16>, vector<32x32xbf16>, vector<64x32xf32> -> vector<64x32xf32>
    %103 = arith.addf %102, %2 : vector<64x32xf32>
    %cst_35 = arith.constant 0.000000e+00 : f32
    %104 = vector.broadcast %cst_35 : f32 to vector<64x32xf32>
    %105 = arith.maximumf %103, %104 : vector<64x32xf32>
    %cst_36 = arith.constant 1.000000e-07 : f32
    %106 = vector.broadcast %cst_36 : f32 to vector<64x32xf32>
    %107 = arith.addf %105, %106 : vector<64x32xf32>
    %cst_37 = arith.constant dense<0xFF800000> : vector<32xf32>
    %108 = vector.multi_reduction <maximumf>, %107, %cst_37 [0] : vector<64x32xf32> to vector<32xf32>
    %109 = vector.shape_cast %108 : vector<32xf32> to vector<1x32xf32>
    %110 = vector.broadcast %109 : vector<1x32xf32> to vector<64x32xf32>
    %111 = arith.subf %107, %110 : vector<64x32xf32>
    %112 = math.exp %111 : vector<64x32xf32>
    %113 = arith.mulf %112, %107 : vector<64x32xf32>
    %114 = tpu.concatenate %113, %112 in 1 : vector<64x32xf32>, vector<64x32xf32> -> vector<64x64xf32>
    %115 = arith.truncf %114 : vector<64x64xf32> to vector<64x64xbf16>
    %cst_38 = arith.constant dense<0.000000e+00> : vector<32x64xf32>
    %116 = tpu.matmul %4, %115, %cst_38 {dimension_numbers = #tpu.dot_dimension_numbers<[1], [0], [0], [1], [0, 0, 1, 1], [], []>} : vector<32x64xbf16>, vector<64x64xbf16>, vector<32x64xf32> -> vector<32x64xf32>
    %117 = vector.extract_strided_slice %116 {offsets = [0, 0], sizes = [32, 32], strides = [1, 1]} : vector<32x64xf32> to vector<32x32xf32>
    %118 = vector.extract_strided_slice %116 {offsets = [0, 32], sizes = [32, 32], strides = [1, 1]} : vector<32x64xf32> to vector<32x32xf32>
    %cst_39 = arith.constant 0.000000e+00 : f32
    %119 = vector.broadcast %cst_39 : f32 to vector<32x32xf32>
    %120 = arith.cmpf ogt, %118, %119 : vector<32x32xf32>
    %cst_40 = arith.constant 1.000000e+00 : f32
    %121 = vector.broadcast %cst_40 : f32 to vector<32x32xf32>
    %122 = arith.select %120, %118, %121 : vector<32x32xi1>, vector<32x32xf32>
    %123 = tpu.reciprocal %122 {approx = true} : vector<32x32xf32> -> vector<32x32xf32>
    %124 = arith.mulf %117, %123 : vector<32x32xf32>
    %cst_41 = arith.constant 0.000000e+00 : f32
    %125 = vector.broadcast %cst_41 : f32 to vector<32x32xf32>
    %126 = arith.select %120, %124, %125 : vector<32x32xi1>, vector<32x32xf32>
    %127 = arith.addf %100, %126 : vector<32x32xf32>
    %c1 = arith.constant 1 : index
    %c0_42 = arith.constant 0 : index
    %c0_43 = arith.constant 0 : index
    %128 = vector.load %arg4[%c1, %c0_42, %c0_43] : memref<3x32x64xf32, #tpu.memory_space<vmem>>, vector<1x32x64xf32>
    %129 = vector.shape_cast %128 : vector<1x32x64xf32> to vector<32x64xf32>
    %cst_44 = arith.constant dense<0.000000e+00> : vector<32x64xf32>
    %130 = tpu.matmul %127, %129, %cst_44 {dimension_numbers = #tpu.dot_dimension_numbers<[1], [0], [0], [1], [0, 0, 1, 1], [], []>} : vector<32x32xf32>, vector<32x64xf32>, vector<32x64xf32> -> vector<32x64xf32>
    %131 = vector.broadcast %71 : vector<1x64xf32> to vector<32x64xf32>
    %132 = arith.addf %130, %131 : vector<32x64xf32>
    %cst_45 = arith.constant dense<0.000000e+00> : vector<32xf32>
    %133 = vector.multi_reduction <add>, %132, %cst_45 [1] : vector<32x64xf32> to vector<32xf32>
    %134 = vector.shape_cast %133 : vector<32xf32> to vector<32x1xf32>
    %cst_46 = arith.constant 6.400000e+01 : f32
    %135 = vector.broadcast %cst_46 : f32 to vector<32x1xf32>
    %136 = arith.divf %134, %135 : vector<32x1xf32>
    %137 = vector.broadcast %136 : vector<32x1xf32> to vector<32x64xf32>
    %138 = arith.subf %132, %137 : vector<32x64xf32>
    %139 = arith.mulf %138, %138 : vector<32x64xf32>
    %cst_47 = arith.constant dense<0.000000e+00> : vector<32xf32>
    %140 = vector.multi_reduction <add>, %139, %cst_47 [1] : vector<32x64xf32> to vector<32xf32>
    %141 = vector.shape_cast %140 : vector<32xf32> to vector<32x1xf32>
    %cst_48 = arith.constant 6.400000e+01 : f32
    %142 = vector.broadcast %cst_48 : f32 to vector<32x1xf32>
    %143 = arith.divf %141, %142 : vector<32x1xf32>
    %144 = vector.broadcast %136 : vector<32x1xf32> to vector<32x64xf32>
    %145 = arith.subf %132, %144 : vector<32x64xf32>
    %cst_49 = arith.constant 9.99999974E-6 : f32
    %146 = vector.broadcast %cst_49 : f32 to vector<32x1xf32>
    %147 = arith.addf %143, %146 : vector<32x1xf32>
    %148 = math.rsqrt %147 : vector<32x1xf32>
    %149 = vector.broadcast %148 : vector<32x1xf32> to vector<32x64xf32>
    %150 = arith.mulf %145, %149 : vector<32x64xf32>
    %151 = vector.broadcast %72 : vector<1x64xf32> to vector<32x64xf32>
    %152 = arith.mulf %150, %151 : vector<32x64xf32>
    %153 = vector.broadcast %73 : vector<1x64xf32> to vector<32x64xf32>
    %154 = arith.addf %152, %153 : vector<32x64xf32>
    %cst_50 = arith.constant 0.000000e+00 : f32
    %155 = vector.broadcast %cst_50 : f32 to vector<32x64xf32>
    %156 = arith.maximumf %154, %155 : vector<32x64xf32>
    %c1_51 = arith.constant 1 : index
    %c0_52 = arith.constant 0 : index
    %c0_53 = arith.constant 0 : index
    %157 = vector.load %arg5[%c1_51, %c0_52, %c0_53] : memref<3x64x32xf32, #tpu.memory_space<vmem>>, vector<1x64x32xf32>
    %158 = vector.shape_cast %157 : vector<1x64x32xf32> to vector<64x32xf32>
    %cst_54 = arith.constant dense<0.000000e+00> : vector<32x32xf32>
    %159 = tpu.matmul %156, %158, %cst_54 {dimension_numbers = #tpu.dot_dimension_numbers<[1], [0], [0], [1], [0, 0, 1, 1], [], []>} : vector<32x64xf32>, vector<64x32xf32>, vector<32x32xf32> -> vector<32x32xf32>
    %160 = vector.broadcast %74 : vector<1x32xf32> to vector<32x32xf32>
    %161 = arith.addf %159, %160 : vector<32x32xf32>
    %162 = arith.addf %161, %70 : vector<32x32xf32>
    %163 = vector.extract_strided_slice %5 {offsets = [14, 0], sizes = [1, 64], strides = [1, 1]} : vector<18x64xf32> to vector<1x64xf32>
    %164 = vector.extract_strided_slice %5 {offsets = [15, 0], sizes = [1, 64], strides = [1, 1]} : vector<18x64xf32> to vector<1x64xf32>
    %165 = vector.extract_strided_slice %5 {offsets = [16, 0], sizes = [1, 64], strides = [1, 1]} : vector<18x64xf32> to vector<1x64xf32>
    %166 = vector.extract_strided_slice %5 {offsets = [17, 0], sizes = [1, 32], strides = [1, 1]} : vector<18x64xf32> to vector<1x32xf32>
    %167 = vector.extract_strided_slice %5 {offsets = [6, 0], sizes = [1, 32], strides = [1, 1]} : vector<18x64xf32> to vector<1x32xf32>
    %168 = vector.extract_strided_slice %5 {offsets = [7, 0], sizes = [1, 32], strides = [1, 1]} : vector<18x64xf32> to vector<1x32xf32>
    %cst_55 = arith.constant dense<0.000000e+00> : vector<32xf32>
    %169 = vector.multi_reduction <add>, %162, %cst_55 [1] : vector<32x32xf32> to vector<32xf32>
    %170 = vector.shape_cast %169 : vector<32xf32> to vector<32x1xf32>
    %cst_56 = arith.constant 3.200000e+01 : f32
    %171 = vector.broadcast %cst_56 : f32 to vector<32x1xf32>
    %172 = arith.divf %170, %171 : vector<32x1xf32>
    %173 = vector.broadcast %172 : vector<32x1xf32> to vector<32x32xf32>
    %174 = arith.subf %162, %173 : vector<32x32xf32>
    %175 = arith.mulf %174, %174 : vector<32x32xf32>
    %cst_57 = arith.constant dense<0.000000e+00> : vector<32xf32>
    %176 = vector.multi_reduction <add>, %175, %cst_57 [1] : vector<32x32xf32> to vector<32xf32>
    %177 = vector.shape_cast %176 : vector<32xf32> to vector<32x1xf32>
    %cst_58 = arith.constant 3.200000e+01 : f32
    %178 = vector.broadcast %cst_58 : f32 to vector<32x1xf32>
    %179 = arith.divf %177, %178 : vector<32x1xf32>
    %180 = vector.broadcast %172 : vector<32x1xf32> to vector<32x32xf32>
    %181 = arith.subf %162, %180 : vector<32x32xf32>
    %cst_59 = arith.constant 9.99999974E-6 : f32
    %182 = vector.broadcast %cst_59 : f32 to vector<32x1xf32>
    %183 = arith.addf %179, %182 : vector<32x1xf32>
    %184 = math.rsqrt %183 : vector<32x1xf32>
    %185 = vector.broadcast %184 : vector<32x1xf32> to vector<32x32xf32>
    %186 = arith.mulf %181, %185 : vector<32x32xf32>
    %187 = vector.broadcast %167 : vector<1x32xf32> to vector<32x32xf32>
    %188 = arith.mulf %186, %187 : vector<32x32xf32>
    %189 = vector.broadcast %168 : vector<1x32xf32> to vector<32x32xf32>
    %190 = arith.addf %188, %189 : vector<32x32xf32>
    %cst_60 = arith.constant 0.000000e+00 : f32
    %191 = vector.broadcast %cst_60 : f32 to vector<32x32xf32>
    %192 = arith.maximumf %190, %191 : vector<32x32xf32>
    %193 = arith.truncf %192 : vector<32x32xf32> to vector<32x32xbf16>
    %cst_61 = arith.constant dense<0.000000e+00> : vector<64x32xf32>
    %194 = tpu.matmul %3, %193, %cst_61 {dimension_numbers = #tpu.dot_dimension_numbers<[1], [0], [0], [1], [0, 0, 1, 1], [], []>} : vector<64x32xbf16>, vector<32x32xbf16>, vector<64x32xf32> -> vector<64x32xf32>
    %195 = arith.addf %194, %2 : vector<64x32xf32>
    %cst_62 = arith.constant 0.000000e+00 : f32
    %196 = vector.broadcast %cst_62 : f32 to vector<64x32xf32>
    %197 = arith.maximumf %195, %196 : vector<64x32xf32>
    %cst_63 = arith.constant 1.000000e-07 : f32
    %198 = vector.broadcast %cst_63 : f32 to vector<64x32xf32>
    %199 = arith.addf %197, %198 : vector<64x32xf32>
    %cst_64 = arith.constant dense<0xFF800000> : vector<32xf32>
    %200 = vector.multi_reduction <maximumf>, %199, %cst_64 [0] : vector<64x32xf32> to vector<32xf32>
    %201 = vector.shape_cast %200 : vector<32xf32> to vector<1x32xf32>
    %202 = vector.broadcast %201 : vector<1x32xf32> to vector<64x32xf32>
    %203 = arith.subf %199, %202 : vector<64x32xf32>
    %204 = math.exp %203 : vector<64x32xf32>
    %205 = arith.mulf %204, %199 : vector<64x32xf32>
    %206 = tpu.concatenate %205, %204 in 1 : vector<64x32xf32>, vector<64x32xf32> -> vector<64x64xf32>
    %207 = arith.truncf %206 : vector<64x64xf32> to vector<64x64xbf16>
    %cst_65 = arith.constant dense<0.000000e+00> : vector<32x64xf32>
    %208 = tpu.matmul %4, %207, %cst_65 {dimension_numbers = #tpu.dot_dimension_numbers<[1], [0], [0], [1], [0, 0, 1, 1], [], []>} : vector<32x64xbf16>, vector<64x64xbf16>, vector<32x64xf32> -> vector<32x64xf32>
    %209 = vector.extract_strided_slice %208 {offsets = [0, 0], sizes = [32, 32], strides = [1, 1]} : vector<32x64xf32> to vector<32x32xf32>
    %210 = vector.extract_strided_slice %208 {offsets = [0, 32], sizes = [32, 32], strides = [1, 1]} : vector<32x64xf32> to vector<32x32xf32>
    %cst_66 = arith.constant 0.000000e+00 : f32
    %211 = vector.broadcast %cst_66 : f32 to vector<32x32xf32>
    %212 = arith.cmpf ogt, %210, %211 : vector<32x32xf32>
    %cst_67 = arith.constant 1.000000e+00 : f32
    %213 = vector.broadcast %cst_67 : f32 to vector<32x32xf32>
    %214 = arith.select %212, %210, %213 : vector<32x32xi1>, vector<32x32xf32>
    %215 = tpu.reciprocal %214 {approx = true} : vector<32x32xf32> -> vector<32x32xf32>
    %216 = arith.mulf %209, %215 : vector<32x32xf32>
    %cst_68 = arith.constant 0.000000e+00 : f32
    %217 = vector.broadcast %cst_68 : f32 to vector<32x32xf32>
    %218 = arith.select %212, %216, %217 : vector<32x32xi1>, vector<32x32xf32>
    %219 = arith.addf %192, %218 : vector<32x32xf32>
    %c2 = arith.constant 2 : index
    %c0_69 = arith.constant 0 : index
    %c0_70 = arith.constant 0 : index
    %220 = vector.load %arg4[%c2, %c0_69, %c0_70] : memref<3x32x64xf32, #tpu.memory_space<vmem>>, vector<1x32x64xf32>
    %221 = vector.shape_cast %220 : vector<1x32x64xf32> to vector<32x64xf32>
    %cst_71 = arith.constant dense<0.000000e+00> : vector<32x64xf32>
    %222 = tpu.matmul %219, %221, %cst_71 {dimension_numbers = #tpu.dot_dimension_numbers<[1], [0], [0], [1], [0, 0, 1, 1], [], []>} : vector<32x32xf32>, vector<32x64xf32>, vector<32x64xf32> -> vector<32x64xf32>
    %223 = vector.broadcast %163 : vector<1x64xf32> to vector<32x64xf32>
    %224 = arith.addf %222, %223 : vector<32x64xf32>
    %cst_72 = arith.constant dense<0.000000e+00> : vector<32xf32>
    %225 = vector.multi_reduction <add>, %224, %cst_72 [1] : vector<32x64xf32> to vector<32xf32>
    %226 = vector.shape_cast %225 : vector<32xf32> to vector<32x1xf32>
    %cst_73 = arith.constant 6.400000e+01 : f32
    %227 = vector.broadcast %cst_73 : f32 to vector<32x1xf32>
    %228 = arith.divf %226, %227 : vector<32x1xf32>
    %229 = vector.broadcast %228 : vector<32x1xf32> to vector<32x64xf32>
    %230 = arith.subf %224, %229 : vector<32x64xf32>
    %231 = arith.mulf %230, %230 : vector<32x64xf32>
    %cst_74 = arith.constant dense<0.000000e+00> : vector<32xf32>
    %232 = vector.multi_reduction <add>, %231, %cst_74 [1] : vector<32x64xf32> to vector<32xf32>
    %233 = vector.shape_cast %232 : vector<32xf32> to vector<32x1xf32>
    %cst_75 = arith.constant 6.400000e+01 : f32
    %234 = vector.broadcast %cst_75 : f32 to vector<32x1xf32>
    %235 = arith.divf %233, %234 : vector<32x1xf32>
    %236 = vector.broadcast %228 : vector<32x1xf32> to vector<32x64xf32>
    %237 = arith.subf %224, %236 : vector<32x64xf32>
    %cst_76 = arith.constant 9.99999974E-6 : f32
    %238 = vector.broadcast %cst_76 : f32 to vector<32x1xf32>
    %239 = arith.addf %235, %238 : vector<32x1xf32>
    %240 = math.rsqrt %239 : vector<32x1xf32>
    %241 = vector.broadcast %240 : vector<32x1xf32> to vector<32x64xf32>
    %242 = arith.mulf %237, %241 : vector<32x64xf32>
    %243 = vector.broadcast %164 : vector<1x64xf32> to vector<32x64xf32>
    %244 = arith.mulf %242, %243 : vector<32x64xf32>
    %245 = vector.broadcast %165 : vector<1x64xf32> to vector<32x64xf32>
    %246 = arith.addf %244, %245 : vector<32x64xf32>
    %cst_77 = arith.constant 0.000000e+00 : f32
    %247 = vector.broadcast %cst_77 : f32 to vector<32x64xf32>
    %248 = arith.maximumf %246, %247 : vector<32x64xf32>
    %c2_78 = arith.constant 2 : index
    %c0_79 = arith.constant 0 : index
    %c0_80 = arith.constant 0 : index
    %249 = vector.load %arg5[%c2_78, %c0_79, %c0_80] : memref<3x64x32xf32, #tpu.memory_space<vmem>>, vector<1x64x32xf32>
    %250 = vector.shape_cast %249 : vector<1x64x32xf32> to vector<64x32xf32>
    %cst_81 = arith.constant dense<0.000000e+00> : vector<32x32xf32>
    %251 = tpu.matmul %248, %250, %cst_81 {dimension_numbers = #tpu.dot_dimension_numbers<[1], [0], [0], [1], [0, 0, 1, 1], [], []>} : vector<32x64xf32>, vector<64x32xf32>, vector<32x32xf32> -> vector<32x32xf32>
    %252 = vector.broadcast %166 : vector<1x32xf32> to vector<32x32xf32>
    %253 = arith.addf %251, %252 : vector<32x32xf32>
    %254 = arith.addf %253, %162 : vector<32x32xf32>
    %255 = vector.extract_strided_slice %5 {offsets = [12, 0], sizes = [1, 32], strides = [1, 1]} : vector<18x64xf32> to vector<1x32xf32>
    %256 = vector.extract_strided_slice %5 {offsets = [13, 0], sizes = [1, 32], strides = [1, 1]} : vector<18x64xf32> to vector<1x32xf32>
    %cst_82 = arith.constant dense<0.000000e+00> : vector<32xf32>
    %257 = vector.multi_reduction <add>, %254, %cst_82 [1] : vector<32x32xf32> to vector<32xf32>
    %258 = vector.shape_cast %257 : vector<32xf32> to vector<32x1xf32>
    %cst_83 = arith.constant 3.200000e+01 : f32
    %259 = vector.broadcast %cst_83 : f32 to vector<32x1xf32>
    %260 = arith.divf %258, %259 : vector<32x1xf32>
    %261 = vector.broadcast %260 : vector<32x1xf32> to vector<32x32xf32>
    %262 = arith.subf %254, %261 : vector<32x32xf32>
    %263 = arith.mulf %262, %262 : vector<32x32xf32>
    %cst_84 = arith.constant dense<0.000000e+00> : vector<32xf32>
    %264 = vector.multi_reduction <add>, %263, %cst_84 [1] : vector<32x32xf32> to vector<32xf32>
    %265 = vector.shape_cast %264 : vector<32xf32> to vector<32x1xf32>
    %cst_85 = arith.constant 3.200000e+01 : f32
    %266 = vector.broadcast %cst_85 : f32 to vector<32x1xf32>
    %267 = arith.divf %265, %266 : vector<32x1xf32>
    %268 = vector.broadcast %260 : vector<32x1xf32> to vector<32x32xf32>
    %269 = arith.subf %254, %268 : vector<32x32xf32>
    %cst_86 = arith.constant 9.99999974E-6 : f32
    %270 = vector.broadcast %cst_86 : f32 to vector<32x1xf32>
    %271 = arith.addf %267, %270 : vector<32x1xf32>
    %272 = math.rsqrt %271 : vector<32x1xf32>
    %273 = vector.broadcast %272 : vector<32x1xf32> to vector<32x32xf32>
    %274 = arith.mulf %269, %273 : vector<32x32xf32>
    %275 = vector.broadcast %255 : vector<1x32xf32> to vector<32x32xf32>
    %276 = arith.mulf %274, %275 : vector<32x32xf32>
    %277 = vector.broadcast %256 : vector<1x32xf32> to vector<32x32xf32>
    %278 = arith.addf %276, %277 : vector<32x32xf32>
    %c0_87 = arith.constant 0 : index
    %c0_88 = arith.constant 0 : index
    %279 = vector.load %arg3[%c0_87, %c0_88] : memref<2x32xf32, #tpu.memory_space<vmem>>, vector<2x32xf32>
    %cst_89 = arith.constant dense<0.000000e+00> : vector<2x32xf32>
    %280 = tpu.matmul %279, %278, %cst_89 {dimension_numbers = #tpu.dot_dimension_numbers<[1], [0], [0], [1], [0, 0, 1, 1], [], []>} : vector<2x32xf32>, vector<32x32xf32>, vector<2x32xf32> -> vector<2x32xf32>
    %c0_90 = arith.constant 0 : index
    %c0_91 = arith.constant 0 : index
    %281 = vector.load %arg6[%c0_90, %c0_91] : memref<33x128xf32, #tpu.memory_space<vmem>>, vector<33x128xf32>
    %282 = vector.extract_strided_slice %281 {offsets = [0, 0], sizes = [32, 128], strides = [1, 1]} : vector<33x128xf32> to vector<32x128xf32>
    %cst_92 = arith.constant dense<0.000000e+00> : vector<2x128xf32>
    %283 = tpu.matmul %280, %282, %cst_92 {dimension_numbers = #tpu.dot_dimension_numbers<[1], [0], [0], [1], [0, 0, 1, 1], [], []>} : vector<2x32xf32>, vector<32x128xf32>, vector<2x128xf32> -> vector<2x128xf32>
    %284 = vector.extract_strided_slice %281 {offsets = [32, 0], sizes = [1, 128], strides = [1, 1]} : vector<33x128xf32> to vector<1x128xf32>
    %285 = vector.broadcast %284 : vector<1x128xf32> to vector<2x128xf32>
    %286 = arith.addf %283, %285 : vector<2x128xf32>
    %c0_93 = arith.constant 0 : index
    %c0_94 = arith.constant 0 : index
    %287 = vector.load %arg8[%c0_93, %c0_94] : memref<2x128xf32, #tpu.memory_space<vmem>>, vector<2x128xf32>
    tpu.vector_store %arg8[%c0_93, %c0_94], %286 {strides = array<i32>} : memref<2x128xf32, #tpu.memory_space<vmem>>, vector<2x128xf32>,
    return
  }
}

</mosaic_0001>

<llo_original>
// kernel: tpu_custom_call.1
$region0: #{tpu_custom_call.1}
  #allocation0 [shape = 'u32[]', space=smem, size = 0x4, offset = 0x4, fixed_abs, tag = 'smem constant byte address 0x4 - core index']
  #allocation1 [shape = 'u32[144,128]{1,0:T(1,128)}', space=vmem, size = 0x12000, scoped, tag = 'internal scratch']
  %s0 = inlined_call_operand.vmem [shape: f32[96,32], index: 0, kind: input, shape index: {}]
  %s1 = inlined_call_operand.vmem [shape: bf16[64,32], index: 1, kind: input, shape index: {}]
  %s2 = inlined_call_operand.vmem [shape: bf16[32,64], index: 2, kind: input, shape index: {}]
  %s3 = inlined_call_operand.vmem [shape: f32[2,32], index: 3, kind: input, shape index: {}]
  %s4 = inlined_call_operand.vmem [shape: f32[3,32,64], index: 4, kind: input, shape index: {}]
  %s5 = inlined_call_operand.vmem [shape: f32[3,64,32], index: 5, kind: input, shape index: {}]
  %s6 = inlined_call_operand.vmem [shape: f32[33,128], index: 6, kind: input, shape index: {}]
  %s7 = inlined_call_operand.vmem [shape: f32[18,64], index: 7, kind: input, shape index: {}]
  %s8 = inlined_call_operand.hbm [shape: f32[2,128], index: 8, kind: output, shape index: {}]
  %s9 = sld [smem:[#allocation0]]
  $region42: #{tpu_custom_call.1} parent=0
    _
  %s11 = ssub.s32 1, %s9
  %s12 = scalar_select 0, %s11, %s9
  $region1: #{tpu_custom_call.1} parent=0
    #allocation2 [shape = 'u8[1024]{0}', space=vmem, size = 0x400, scoped, tag = 'output window, operand 0, single buffered']
    #allocation3 [shape = 's32[1]{0}', space=sflag, size = 0x4, scoped, tag = 'scoped memory for tpu_custom_call.1']
    %13 = vsyncpa [#allocation3], 0
    // Predicated region
    $region2: #{tpu_custom_call.1} parent=1 // pred_check
      _
    $region3: #{tpu_custom_call.1} parent=1 // pred_check_branch
      %15 = sbr.rel (0) target = $region5
    $region4: #{tpu_custom_call.1} parent=1 // pred_region
      _
    $region5: #{tpu_custom_call.1} parent=1 // pred_fallthru
      _
    // Predicated region
    $region6: #{tpu_custom_call.1} parent=1 // pred_check
      _
    $region7: #{tpu_custom_call.1} parent=1 // pred_check_branch
      %17 = sbr.rel (0) target = $region9
    $region8: #{tpu_custom_call.1} parent=1 // pred_region
      _
    $region9: #{tpu_custom_call.1} parent=1 // pred_fallthru
      _
    // Predicated region
    $region10: #{tpu_custom_call.1} parent=1 // pred_check
      _
    $region11: #{tpu_custom_call.1} parent=1 // pred_check_branch
      %19 = sbr.rel (0) target = $region13
    $region12: #{tpu_custom_call.1} parent=1 // pred_region
      _
    $region13: #{tpu_custom_call.1} parent=1 // pred_fallthru
      _
    // Predicated region
    $region14: #{tpu_custom_call.1} parent=1 // pred_check
      _
    $region15: #{tpu_custom_call.1} parent=1 // pred_check_branch
      %21 = sbr.rel (0) target = $region17
    $region16: #{tpu_custom_call.1} parent=1 // pred_region
      _
    $region17: #{tpu_custom_call.1} parent=1 // pred_fallthru
      _
    // Predicated region
    $region18: #{tpu_custom_call.1} parent=1 // pred_check
      _
    $region19: #{tpu_custom_call.1} parent=1 // pred_check_branch
      %23 = sbr.rel (0) target = $region21
    $region20: #{tpu_custom_call.1} parent=1 // pred_region
      _
    $region21: #{tpu_custom_call.1} parent=1 // pred_fallthru
      _
    // Predicated region
    $region22: #{tpu_custom_call.1} parent=1 // pred_check
      _
    $region23: #{tpu_custom_call.1} parent=1 // pred_check_branch
      %25 = sbr.rel (0) target = $region25
    $region24: #{tpu_custom_call.1} parent=1 // pred_region
      _
    $region25: #{tpu_custom_call.1} parent=1 // pred_fallthru
      _
    // Predicated region
    $region26: #{tpu_custom_call.1} parent=1 // pred_check
      _
    $region27: #{tpu_custom_call.1} parent=1 // pred_check_branch
      %27 = sbr.rel (0) target = $region29
    $region28: #{tpu_custom_call.1} parent=1 // pred_region
      _
    $region29: #{tpu_custom_call.1} parent=1 // pred_fallthru
      _
    // Predicated region
    $region30: #{tpu_custom_call.1} parent=1 // pred_check
      _
    $region31: #{tpu_custom_call.1} parent=1 // pred_check_branch
      %29 = sbr.rel (0) target = $region33
    $region32: #{tpu_custom_call.1} parent=1 // pred_region
      _
    $region33: #{tpu_custom_call.1} parent=1 // pred_fallthru
      _
    %v31 = vld [vmem:[%s0] sm:$0xff]
    %v32 = vld [vmem:[%s0 + $0x8] sm:$0xff]
    %v33 = vld [vmem:[%s0 + $0x10] sm:$0xff]
    %v34 = vld [vmem:[%s0 + $0x18] sm:$0xff]
    %v35 = vld [vmem:[%s0 + $0x20] sm:$0xff]
    %v36 = vld [vmem:[%s0 + $0x28] sm:$0xff]
    %v37 = vld [vmem:[%s0 + $0x30] sm:$0xff]
    %v38 = vld [vmem:[%s0 + $0x38] sm:$0xff]
    %v39 = vld [vmem:[%s0 + $0x40] sm:$0xff]
    %v40 = vld [vmem:[%s0 + $0x48] sm:$0xff]
    %v41 = vld [vmem:[%s0 + $0x50] sm:$0xff]
    %v42 = vld [vmem:[%s0 + $0x58] sm:$0xff]
    %v43 = vld [vmem:[%s1] sm:$0xf]
    %v44 = vld [vmem:[%s1 + $0x4] sm:$0xf]
    %v45 = vld [vmem:[%s1 + $0x8] sm:$0xf]
    %v46 = vld [vmem:[%s1 + $0xc] sm:$0xf]
    %v47 = vld [vmem:[%s1 + $0x10] sm:$0xf]
    %v48 = vld [vmem:[%s1 + $0x14] sm:$0xf]
    %v49 = vld [vmem:[%s1 + $0x18] sm:$0xf]
    %v50 = vld [vmem:[%s1 + $0x1c] sm:$0xf]
    %v51 = vld [vmem:[%s2] sm:$0xf]
    %v52 = vld [vmem:[%s2 + $0x4] sm:$0xf]
    %v53 = vld [vmem:[%s2 + $0x8] sm:$0xf]
    %v54 = vld [vmem:[%s2 + $0xc] sm:$0xf]
    %v55 = vld [vmem:[%s7] sm:$0xff]
    %v56 = vld [vmem:[%s7 + $0x8] sm:$0xff]
    %v57 = vld [vmem:[%s7 + $0x10] sm:$0x3]
    %v58 = vpack.c.bf16 %v32, %v31
    %v59 = vpack.c.bf16 %v34, %v33
    %v68 = vunpack.c.l.b16 %v43
    %v69 = vunpack.c.l.b16 %v44
    %v70 = vunpack.c.l.b16 %v45
    %v71 = vunpack.c.l.b16 %v46
    %v72 = vunpack.c.l.b16 %v47
    %v73 = vunpack.c.l.b16 %v48
    %v74 = vunpack.c.l.b16 %v49
    %v75 = vunpack.c.l.b16 %v50
    %v76 = vpack.c.b16 %v69, %v68
    %v77 = vpack.c.b16 %v71, %v70
    %v78 = vpack.c.b16 %v73, %v72
    %v79 = vpack.c.b16 %v75, %v74
    %vm80 = vcmask 261120
    %v82 = vsel %vm80, %v76, 0
    %v85 = vsel %vm80, %v77, 0
    %v88 = vsel %vm80, %v78, 0
    %v91 = vsel %vm80, %v79, 0
    %93 = vmatprep.subr.bf16.mxu0 0
    %94 = vmatpush1.bf16.msra.mxu0 %v58
    %95 = vmatprep.subr.bf16.mxu0 0
    %96 = vmatpush1.bf16.msra.mxu0 %v59
    %97 = vmatprep.subr.bf16.mxu0 0
    %98 = vmatpush1.bf16.msra.mxu0 0
    %99 = vmatprep.subr.bf16.mxu0 0
    %100 = vmatpush1.bf16.msra.mxu0 0
    %101 = vmatprep.subr.bf16.mxu0 0
    %102 = vmatpush1.bf16.msra.mxu0 0
    %103 = vmatprep.subr.bf16.mxu0 0
    %104 = vmatpush1.bf16.msra.mxu0 0
    %105 = vmatprep.subr.bf16.mxu0 0
    %106 = vmatpush1.bf16.msra.mxu0 0
    %107 = vmatprep.subr.bf16.mxu0 0
    %108 = vmatpush1.bf16.msra.mxu0 0
    %109 = vmatprep.subr.bf16.mxu0 0
    %110 = vmatpush1.bf16.msra.mxu0 0
    %111 = vmatprep.subr.bf16.mxu0 0
    %112 = vmatpush1.bf16.msra.mxu0 0
    %113 = vmatprep.subr.bf16.mxu0 0
    %114 = vmatpush1.bf16.msra.mxu0 0
    %115 = vmatprep.subr.bf16.mxu0 0
    %116 = vmatpush1.bf16.msra.mxu0 0
    %117 = vmatprep.subr.bf16.mxu0 0
    %118 = vmatpush1.bf16.msra.mxu0 0
    %119 = vmatprep.subr.bf16.mxu0 0
    %120 = vmatpush1.bf16.msra.mxu0 0
    %121 = vmatprep.subr.bf16.mxu0 0
    %122 = vmatpush1.bf16.msra.mxu0 0
    %123 = vmatprep.subr.bf16.mxu0 0
    %124 = vmatpush1.bf16.msra.mxu0 0
    %125 = vmatprep.mubr.bf16.mxu0 0
    %126 = vmatmul.mubr.bf16.gmra.mrb[0].mxu0 %v82
    %v127 = vpop.f32.mrb[0].mxu0
    %v128 = vadd.f32 %v35, %v127
    %v129 = vpop.f32.mrb[0].mxu0
    %v130 = vpop.f32.mrb[0].mxu0
    %v131 = vadd.f32 %v36, %v130
    %v132 = vpop.f32.mrb[0].mxu0
    %133 = vmatprep.mubr.bf16.mxu0 0
    %134 = vmatmul.mubr.bf16.gmra.mrb[0].mxu0 %v85
    %v135 = vpop.f32.mrb[0].mxu0
    %v136 = vadd.f32 %v37, %v135
    %v137 = vpop.f32.mrb[0].mxu0
    %v138 = vpop.f32.mrb[0].mxu0
    %v139 = vadd.f32 %v38, %v138
    %v140 = vpop.f32.mrb[0].mxu0
    %141 = vmatprep.mubr.bf16.mxu0 0
    %142 = vmatmul.mubr.bf16.gmra.mrb[0].mxu0 %v88
    %v143 = vpop.f32.mrb[0].mxu0
    %v144 = vadd.f32 %v39, %v143
    %v145 = vpop.f32.mrb[0].mxu0
    %v146 = vpop.f32.mrb[0].mxu0
    %v147 = vadd.f32 %v40, %v146
    %v148 = vpop.f32.mrb[0].mxu0
    %149 = vmatprep.mubr.bf16.mxu0 0
    %150 = vmatmul.mubr.bf16.gmra.mrb[0].mxu0 %v91
    %v151 = vpop.f32.mrb[0].mxu0
    %v152 = vadd.f32 %v41, %v151
    %v153 = vpop.f32.mrb[0].mxu0
    %v154 = vpop.f32.mrb[0].mxu0
    %v155 = vadd.f32 %v42, %v154
    %v156 = vpop.f32.mrb[0].mxu0
    %157 = vdwg.mxu0
    %v158 = vmax.f32 %v128, 0.0
    %v159 = vmax.f32 %v131, 0.0
    %v160 = vmax.f32 %v136, 0.0
    %v161 = vmax.f32 %v139, 0.0
    %v162 = vmax.f32 %v144, 0.0
    %v163 = vmax.f32 %v147, 0.0
    %v164 = vmax.f32 %v152, 0.0
    %v165 = vmax.f32 %v155, 0.0
    %v166 = vadd.f32 %v158, 1e-07
    %v167 = vadd.f32 %v159, 1e-07
    %v168 = vadd.f32 %v160, 1e-07
    %v169 = vadd.f32 %v161, 1e-07
    %v170 = vadd.f32 %v162, 1e-07
    %v171 = vadd.f32 %v163, 1e-07
    %v172 = vadd.f32 %v164, 1e-07
    %v173 = vadd.f32 %v165, 1e-07
    %v174 = vsel %vm80, %v166, -inf
    %v175 = vsel %vm80, %v167, -inf
    %v176 = vsel %vm80, %v168, -inf
    %v177 = vsel %vm80, %v169, -inf
    %v178 = vsel %vm80, %v170, -inf
    %v179 = vmax.f32 %v174, %v178
    %v180 = vsel %vm80, %v171, -inf
    %v181 = vmax.f32 %v175, %v180
    %v182 = vsel %vm80, %v172, -inf
    %v183 = vmax.f32 %v176, %v182
    %v184 = vsel %vm80, %v173, -inf
    %v185 = vmax.f32 %v177, %v184
    %v186 = vmax.f32 %v179, %v181
    %v187 = vmax.f32 %v183, %v185
    %v188 = vmax.f32 %v186, %v187
    %v189 = vrot.slane %v188, 4
    %v190 = vmax.f32 %v188, %v189
    %v191 = vrot.slane %v190, 2
    %v192 = vmax.f32 %v190, %v191
    %v193 = vrot.slane %v192, 1
    %v194 = vmax.f32 %v192, %v193
    %v195 = vsub.f32 %v166, %v194
    %v196 = vsub.f32 %v167, %v194
    %v197 = vsub.f32 %v168, %v194
    %v198 = vsub.f32 %v169, %v194
    %v199 = vsub.f32 %v170, %v194
    %v200 = vsub.f32 %v171, %v194
    %v201 = vsub.f32 %v172, %v194
    %v202 = vsub.f32 %v173, %v194
    %v203 = vmul.f32 %v195, 1.442695
    %v204 = vpow.pop %v203
    %v205 = vmul.f32 %v196, 1.442695
    %v206 = vpow.pop %v205
    %v207 = vmul.f32 %v197, 1.442695
    %v208 = vpow.pop %v207
    %v209 = vmul.f32 %v198, 1.442695
    %v210 = vpow.pop %v209
    %v211 = vmul.f32 %v199, 1.442695
    %v212 = vpow.pop %v211
    %v213 = vmul.f32 %v200, 1.442695
    %v214 = vpow.pop %v213
    %v215 = vmul.f32 %v201, 1.442695
    %v216 = vpow.pop %v215
    %v217 = vmul.f32 %v202, 1.442695
    %v218 = vpow.pop %v217
    %v219 = vmul.f32 %v204, %v166
    %v220 = vmul.f32 %v206, %v167
    %v221 = vmul.f32 %v208, %v168
    %v222 = vmul.f32 %v210, %v169
    %v223 = vmul.f32 %v212, %v170
    %v224 = vmul.f32 %v214, %v171
    %v225 = vmul.f32 %v216, %v172
    %v226 = vmul.f32 %v218, %v173
    %235 = vrot.lane.b32.xlu0 %v204, 32
    %v236 = vpop.permute.xlu0 %235
    %237 = vrot.lane.b32.xlu0 %v206, 32
    %v238 = vpop.permute.xlu0 %237
    %239 = vrot.lane.b32.xlu0 %v208, 32
    %v240 = vpop.permute.xlu0 %239
    %241 = vrot.lane.b32.xlu0 %v210, 32
    %v242 = vpop.permute.xlu0 %241
    %243 = vrot.lane.b32.xlu0 %v212, 32
    %v244 = vpop.permute.xlu0 %243
    %245 = vrot.lane.b32.xlu0 %v214, 32
    %v246 = vpop.permute.xlu0 %245
    %247 = vrot.lane.b32.xlu0 %v216, 32
    %v248 = vpop.permute.xlu0 %247
    %249 = vrot.lane.b32.xlu0 %v218, 32
    %v250 = vpop.permute.xlu0 %249
    %v259 = vsel %vm80, %v219, %v236
    %v260 = vsel %vm80, %v220, %v238
    %v261 = vsel %vm80, %v221, %v240
    %v262 = vsel %vm80, %v222, %v242
    %v263 = vsel %vm80, %v223, %v244
    %v264 = vsel %vm80, %v224, %v246
    %v265 = vsel %vm80, %v225, %v248
    %v266 = vsel %vm80, %v226, %v250
    %v267 = vpack.c.bf16 %v260, %v259
    %v268 = vpack.c.bf16 %v262, %v261
    %v269 = vpack.c.bf16 %v264, %v263
    %v270 = vpack.c.bf16 %v266, %v265
    %v275 = vunpack.c.l.b16 %v51
    %v276 = vunpack.c.l.b16 %v52
    %v277 = vunpack.c.l.b16 %v53
    %v278 = vunpack.c.l.b16 %v54
    %v279 = vpack.c.b16 %v276, %v275
    %v280 = vpack.c.b16 %v278, %v277
    %vm281 = vcmask 523264
    %v283 = vsel %vm281, %v279, 0
    %v286 = vsel %vm281, %v280, 0
    %288 = vmatprep.subr.bf16.mxu0 0
    %289 = vmatpush1.bf16.msra.mxu0 %v267
    %290 = vmatprep.subr.bf16.mxu0 0
    %291 = vmatpush1.bf16.msra.mxu0 %v268
    %292 = vmatprep.subr.bf16.mxu0 0
    %293 = vmatpush1.bf16.msra.mxu0 %v269
    %294 = vmatprep.subr.bf16.mxu0 0
    %295 = vmatpush1.bf16.msra.mxu0 %v270
    %296 = vmatprep.subr.bf16.mxu0 0
    %297 = vmatpush1.bf16.msra.mxu0 0
    %298 = vmatprep.subr.bf16.mxu0 0
    %299 = vmatpush1.bf16.msra.mxu0 0
    %300 = vmatprep.subr.bf16.mxu0 0
    %301 = vmatpush1.bf16.msra.mxu0 0
    %302 = vmatprep.subr.bf16.mxu0 0
    %303 = vmatpush1.bf16.msra.mxu0 0
    %304 = vmatprep.subr.bf16.mxu0 0
    %305 = vmatpush1.bf16.msra.mxu0 0
    %306 = vmatprep.subr.bf16.mxu0 0
    %307 = vmatpush1.bf16.msra.mxu0 0
    %308 = vmatprep.subr.bf16.mxu0 0
    %309 = vmatpush1.bf16.msra.mxu0 0
    %310 = vmatprep.subr.bf16.mxu0 0
    %311 = vmatpush1.bf16.msra.mxu0 0
    %312 = vmatprep.subr.bf16.mxu0 0
    %313 = vmatpush1.bf16.msra.mxu0 0
    %314 = vmatprep.subr.bf16.mxu0 0
    %315 = vmatpush1.bf16.msra.mxu0 0
    %316 = vmatprep.subr.bf16.mxu0 0
    %317 = vmatpush1.bf16.msra.mxu0 0
    %318 = vmatprep.subr.bf16.mxu0 0
    %319 = vmatpush1.bf16.msra.mxu0 0
    %320 = vmatprep.mubr.bf16.mxu0 0
    %321 = vmatmul.mubr.bf16.gmra.mrb[0].mxu0 %v283
    %v322 = vpop.f32.mrb[0].mxu0
    %v323 = vadd.f32 0.0, %v322
    %v324 = vpop.f32.mrb[0].mxu0
    %v325 = vpop.f32.mrb[0].mxu0
    %v326 = vadd.f32 0.0, %v325
    %v327 = vpop.f32.mrb[0].mxu0
    %328 = vmatprep.mubr.bf16.mxu0 0
    %329 = vmatmul.mubr.bf16.gmra.mrb[0].mxu0 %v286
    %v330 = vpop.f32.mrb[0].mxu0
    %v331 = vadd.f32 0.0, %v330
    %v332 = vpop.f32.mrb[0].mxu0
    %v333 = vpop.f32.mrb[0].mxu0
    %v334 = vadd.f32 0.0, %v333
    %v335 = vpop.f32.mrb[0].mxu0
    %336 = vdwg.mxu0
    %vm337 = vcmp.gt.f32.partialorder %v323, 0.0
    %vm338 = vcmp.gt.f32.partialorder %v326, 0.0
    %vm339 = vcmp.gt.f32.partialorder %v331, 0.0
    %vm340 = vcmp.gt.f32.partialorder %v334, 0.0
    %v341 = vsel %vm337, %v323, 1.0
    %v342 = vsel %vm338, %v326, 1.0
    %v343 = vsel %vm339, %v331, 1.0
    %v344 = vsel %vm340, %v334, 1.0
    %v345 = vrcp.pop %v341
    %v346 = vrcp.pop %v342
    %v347 = vrcp.pop %v343
    %v348 = vrcp.pop %v344
    %353 = vrot.lane.b32.xlu0 %v345, 96
    %v354 = vpop.permute.xlu0 %353
    %355 = vrot.lane.b32.xlu0 %v346, 96
    %v356 = vpop.permute.xlu0 %355
    %357 = vrot.lane.b32.xlu0 %v347, 96
    %v358 = vpop.permute.xlu0 %357
    %359 = vrot.lane.b32.xlu0 %v348, 96
    %v360 = vpop.permute.xlu0 %359
    %v365 = vmul.f32 %v323, %v354
    %v366 = vmul.f32 %v326, %v356
    %v367 = vmul.f32 %v331, %v358
    %v368 = vmul.f32 %v334, %v360
    %373 = vrot.lane.b32.xlu0 %v365, 32
    %v374 = vpop.permute.xlu0 %373
    %375 = vrot.lane.b32.xlu0 %v366, 32
    %v376 = vpop.permute.xlu0 %375
    %377 = vrot.lane.b32.xlu0 %v367, 32
    %v378 = vpop.permute.xlu0 %377
    %379 = vrot.lane.b32.xlu0 %v368, 32
    %v380 = vpop.permute.xlu0 %379
    %v385 = vsel %vm337, %v374, 0.0
    %v386 = vsel %vm338, %v376, 0.0
    %v387 = vsel %vm339, %v378, 0.0
    %v388 = vsel %vm340, %v380, 0.0
    %393 = vrot.lane.b32.xlu0 %v385, 96
    %v394 = vpop.permute.xlu0 %393
    %395 = vrot.lane.b32.xlu0 %v386, 96
    %v396 = vpop.permute.xlu0 %395
    %397 = vrot.lane.b32.xlu0 %v387, 96
    %v398 = vpop.permute.xlu0 %397
    %399 = vrot.lane.b32.xlu0 %v388, 96
    %v400 = vpop.permute.xlu0 %399
    %v405 = vadd.f32 %v31, %v394
    %v406 = vadd.f32 %v32, %v396
    %v407 = vadd.f32 %v33, %v398
    %v408 = vadd.f32 %v34, %v400
    %v409 = vld [vmem:[%s4] sm:$0xff]
    %v410 = vld [vmem:[%s4 + $0x8] sm:$0xff]
    %v411 = vld [vmem:[%s4 + $0x10] sm:$0xff]
    %v412 = vld [vmem:[%s4 + $0x18] sm:$0xff]
    %v413 = vlaneseq
    %v414 = vshrl.u32 %v413, 7
    %v415 = vsub.s32 2, %v414
    %v416 = vrot.slane %v55, %v415
    %v418 = vsel %vm80, %v405, 0
    %v421 = vsel %vm80, %v406, 0
    %v424 = vsel %vm80, %v407, 0
    %v427 = vsel %vm80, %v408, 0
    %429 = vmatprep.subr.mxu0 0.0
    %430 = vmatpush1.msra.mxu0 %v409
    %431 = vmatprep.subr.mxu0 0.0
    %432 = vmatpush1.msra.mxu0 %v410
    %433 = vmatprep.subr.mxu0 0.0
    %434 = vmatpush1.msra.mxu0 %v411
    %435 = vmatprep.subr.mxu0 0.0
    %436 = vmatpush1.msra.mxu0 %v412
    %437 = vmatprep.subr.mxu0 0.0
    %438 = vmatpush1.msra.mxu0 0.0
    %439 = vmatprep.subr.mxu0 0.0
    %440 = vmatpush1.msra.mxu0 0.0
    %441 = vmatprep.subr.mxu0 0.0
    %442 = vmatpush1.msra.mxu0 0.0
    %443 = vmatprep.subr.mxu0 0.0
    %444 = vmatpush1.msra.mxu0 0.0
    %445 = vmatprep.subr.mxu0 0.0
    %446 = vmatpush1.msra.mxu0 0.0
    %447 = vmatprep.subr.mxu0 0.0
    %448 = vmatpush1.msra.mxu0 0.0
    %449 = vmatprep.subr.mxu0 0.0
    %450 = vmatpush1.msra.mxu0 0.0
    %451 = vmatprep.subr.mxu0 0.0
    %452 = vmatpush1.msra.mxu0 0.0
    %453 = vmatprep.subr.mxu0 0.0
    %454 = vmatpush1.msra.mxu0 0.0
    %455 = vmatprep.subr.mxu0 0.0
    %456 = vmatpush1.msra.mxu0 0.0
    %457 = vmatprep.subr.mxu0 0.0
    %458 = vmatpush1.msra.mxu0 0.0
    %459 = vmatprep.subr.mxu0 0.0
    %460 = vmatpush1.msra.mxu0 0.0
    %461 = vmatprep.subr.mxu0 0.0
    %462 = vmatpush1.msra.mxu0 0.0
    %463 = vmatprep.subr.mxu0 0.0
    %464 = vmatpush1.msra.mxu0 0.0
    %465 = vmatprep.subr.mxu0 0.0
    %466 = vmatpush1.msra.mxu0 0.0
    %467 = vmatprep.subr.mxu0 0.0
    %468 = vmatpush1.msra.mxu0 0.0
    %469 = vmatprep.subr.mxu0 0.0
    %470 = vmatpush1.msra.mxu0 0.0
    %471 = vmatprep.subr.mxu0 0.0
    %472 = vmatpush1.msra.mxu0 0.0
    %473 = vmatprep.subr.mxu0 0.0
    %474 = vmatpush1.msra.mxu0 0.0
    %475 = vmatprep.subr.mxu0 0.0
    %476 = vmatpush1.msra.mxu0 0.0
    %477 = vmatprep.subr.mxu0 0.0
    %478 = vmatpush1.msra.mxu0 0.0
    %479 = vmatprep.subr.mxu0 0.0
    %480 = vmatpush1.msra.mxu0 0.0
    %481 = vmatprep.subr.mxu0 0.0
    %482 = vmatpush1.msra.mxu0 0.0
    %483 = vmatprep.subr.mxu0 0.0
    %484 = vmatpush1.msra.mxu0 0.0
    %485 = vmatprep.subr.mxu0 0.0
    %486 = vmatpush1.msra.mxu0 0.0
    %487 = vmatprep.subr.mxu0 0.0
    %488 = vmatpush1.msra.mxu0 0.0
    %489 = vmatprep.subr.mxu0 0.0
    %490 = vmatpush1.msra.mxu0 0.0
    %491 = vmatprep.subr.mxu0 0.0
    %492 = vmatpush1.msra.mxu0 0.0
    %493 = vmatprep.mubr.f32.mxu0 0.0
    %494 = vmatmul.mubr.f32.gmra.mrb[0].mxu0 %v418
    %v495 = vpop.f32.mrb[0].mxu0
    %v496 = vadd.f32 %v416, %v495
    %v497 = vpop.f32.mrb[0].mxu0
    %498 = vmatprep.mubr.f32.mxu0 0.0
    %499 = vmatmul.mubr.f32.gmra.mrb[0].mxu0 %v421
    %v500 = vpop.f32.mrb[0].mxu0
    %v501 = vadd.f32 %v416, %v500
    %v502 = vpop.f32.mrb[0].mxu0
    %503 = vmatprep.mubr.f32.mxu0 0.0
    %504 = vmatmul.mubr.f32.gmra.mrb[0].mxu0 %v424
    %v505 = vpop.f32.mrb[0].mxu0
    %v506 = vadd.f32 %v416, %v505
    %v507 = vpop.f32.mrb[0].mxu0
    %508 = vmatprep.mubr.f32.mxu0 0.0
    %509 = vmatmul.mubr.f32.gmra.mrb[0].mxu0 %v427
    %v510 = vpop.f32.mrb[0].mxu0
    %v511 = vadd.f32 %v416, %v510
    %v512 = vpop.f32.mrb[0].mxu0
    %513 = vdwg.mxu0
    %v514 = vsel %vm281, %v496, 0.0
    %515 = vadd.xlane.f32.xlu0 %v514
    %v516 = vpop.xlane.xlu0 %515
    %v517 = vsel %vm281, %v501, 0.0
    %518 = vadd.xlane.f32.xlu0 %v517
    %v519 = vpop.xlane.xlu0 %518
    %v520 = vsel %vm281, %v506, 0.0
    %521 = vadd.xlane.f32.xlu0 %v520
    %v522 = vpop.xlane.xlu0 %521
    %v523 = vsel %vm281, %v511, 0.0
    %524 = vadd.xlane.f32.xlu0 %v523
    %v525 = vpop.xlane.xlu0 %524
    %v526 = vrcp.pop 64.0
    %v527 = vmul.f32 %v516, %v526
    %v528 = vmul.f32 %v519, %v526
    %v529 = vmul.f32 %v522, %v526
    %v530 = vmul.f32 %v525, %v526
    %v531 = vsub.f32 %v496, %v527
    %v532 = vsub.f32 %v501, %v528
    %v533 = vsub.f32 %v506, %v529
    %v534 = vsub.f32 %v511, %v530
    %v535 = vmul.f32 %v531, %v531
    %v536 = vmul.f32 %v532, %v532
    %v537 = vmul.f32 %v533, %v533
    %v538 = vmul.f32 %v534, %v534
    %v539 = vsel %vm281, %v535, 0.0
    %540 = vadd.xlane.f32.xlu0 %v539
    %v541 = vpop.xlane.xlu0 %540
    %v542 = vsel %vm281, %v536, 0.0
    %543 = vadd.xlane.f32.xlu0 %v542
    %v544 = vpop.xlane.xlu0 %543
    %v545 = vsel %vm281, %v537, 0.0
    %546 = vadd.xlane.f32.xlu0 %v545
    %v547 = vpop.xlane.xlu0 %546
    %v548 = vsel %vm281, %v538, 0.0
    %549 = vadd.xlane.f32.xlu0 %v548
    %v550 = vpop.xlane.xlu0 %549
    %v551 = vmul.f32 %v541, %v526
    %v552 = vmul.f32 %v544, %v526
    %v553 = vmul.f32 %v547, %v526
    %v554 = vmul.f32 %v550, %v526
    %v555 = vadd.f32 %v551, 1e-05
    %v556 = vadd.f32 %v552, 1e-05
    %v557 = vadd.f32 %v553, 1e-05
    %v558 = vadd.f32 %v554, 1e-05
    %v559 = vrsqrt.pop %v555
    %v560 = vrsqrt.pop %v556
    %v561 = vrsqrt.pop %v557
    %v562 = vrsqrt.pop %v558
    %v563 = vmul.f32 %v531, %v559
    %v564 = vmul.f32 %v532, %v560
    %v565 = vmul.f32 %v533, %v561
    %v566 = vmul.f32 %v534, %v562
    %v567 = vlaneseq
    %v568 = vshrl.u32 %v567, 7
    %v569 = vsub.s32 3, %v568
    %v570 = vrot.slane %v55, %v569
    %v571 = vmul.f32 %v563, %v570
    %v572 = vmul.f32 %v564, %v570
    %v573 = vmul.f32 %v565, %v570
    %v574 = vmul.f32 %v566, %v570
    %v575 = vlaneseq
    %v576 = vshrl.u32 %v575, 7
    %v577 = vsub.s32 4, %v576
    %v578 = vrot.slane %v55, %v577
    %v579 = vadd.f32 %v571, %v578
    %v580 = vadd.f32 %v572, %v578
    %v581 = vadd.f32 %v573, %v578
    %v582 = vadd.f32 %v574, %v578
    %v583 = vmax.f32 %v579, 0.0
    %v584 = vmax.f32 %v580, 0.0
    %v585 = vmax.f32 %v581, 0.0
    %v586 = vmax.f32 %v582, 0.0
    %v587 = vld [vmem:[%s5] sm:$0xff]
    %v588 = vld [vmem:[%s5 + $0x8] sm:$0xff]
    %v589 = vld [vmem:[%s5 + $0x10] sm:$0xff]
    %v590 = vld [vmem:[%s5 + $0x18] sm:$0xff]
    %v591 = vld [vmem:[%s5 + $0x20] sm:$0xff]
    %v592 = vld [vmem:[%s5 + $0x28] sm:$0xff]
    %v593 = vld [vmem:[%s5 + $0x30] sm:$0xff]
    %v594 = vld [vmem:[%s5 + $0x38] sm:$0xff]
    %v595 = vlaneseq
    %v596 = vshrl.u32 %v595, 7
    %v597 = vsub.s32 5, %v596
    %v598 = vrot.slane %v55, %v597
    %v600 = vsel %vm281, %v583, 0
    %v603 = vsel %vm281, %v584, 0
    %v606 = vsel %vm281, %v585, 0
    %v609 = vsel %vm281, %v586, 0
    %611 = vmatprep.subr.mxu0 0.0
    %612 = vmatpush1.msra.mxu0 %v587
    %613 = vmatprep.subr.mxu0 0.0
    %614 = vmatpush1.msra.mxu0 %v588
    %615 = vmatprep.subr.mxu0 0.0
    %616 = vmatpush1.msra.mxu0 %v589
    %617 = vmatprep.subr.mxu0 0.0
    %618 = vmatpush1.msra.mxu0 %v590
    %619 = vmatprep.subr.mxu0 0.0
    %620 = vmatpush1.msra.mxu0 %v591
    %621 = vmatprep.subr.mxu0 0.0
    %622 = vmatpush1.msra.mxu0 %v592
    %623 = vmatprep.subr.mxu0 0.0
    %624 = vmatpush1.msra.mxu0 %v593
    %625 = vmatprep.subr.mxu0 0.0
    %626 = vmatpush1.msra.mxu0 %v594
    %627 = vmatprep.subr.mxu0 0.0
    %628 = vmatpush1.msra.mxu0 0.0
    %629 = vmatprep.subr.mxu0 0.0
    %630 = vmatpush1.msra.mxu0 0.0
    %631 = vmatprep.subr.mxu0 0.0
    %632 = vmatpush1.msra.mxu0 0.0
    %633 = vmatprep.subr.mxu0 0.0
    %634 = vmatpush1.msra.mxu0 0.0
    %635 = vmatprep.subr.mxu0 0.0
    %636 = vmatpush1.msra.mxu0 0.0
    %637 = vmatprep.subr.mxu0 0.0
    %638 = vmatpush1.msra.mxu0 0.0
    %639 = vmatprep.subr.mxu0 0.0
    %640 = vmatpush1.msra.mxu0 0.0
    %641 = vmatprep.subr.mxu0 0.0
    %642 = vmatpush1.msra.mxu0 0.0
    %643 = vmatprep.subr.mxu0 0.0
    %644 = vmatpush1.msra.mxu0 0.0
    %645 = vmatprep.subr.mxu0 0.0
    %646 = vmatpush1.msra.mxu0 0.0
    %647 = vmatprep.subr.mxu0 0.0
    %648 = vmatpush1.msra.mxu0 0.0
    %649 = vmatprep.subr.mxu0 0.0
    %650 = vmatpush1.msra.mxu0 0.0
    %651 = vmatprep.subr.mxu0 0.0
    %652 = vmatpush1.msra.mxu0 0.0
    %653 = vmatprep.subr.mxu0 0.0
    %654 = vmatpush1.msra.mxu0 0.0
    %655 = vmatprep.subr.mxu0 0.0
    %656 = vmatpush1.msra.mxu0 0.0
    %657 = vmatprep.subr.mxu0 0.0
    %658 = vmatpush1.msra.mxu0 0.0
    %659 = vmatprep.subr.mxu0 0.0
    %660 = vmatpush1.msra.mxu0 0.0
    %661 = vmatprep.subr.mxu0 0.0
    %662 = vmatpush1.msra.mxu0 0.0
    %663 = vmatprep.subr.mxu0 0.0
    %664 = vmatpush1.msra.mxu0 0.0
    %665 = vmatprep.subr.mxu0 0.0
    %666 = vmatpush1.msra.mxu0 0.0
    %667 = vmatprep.subr.mxu0 0.0
    %668 = vmatpush1.msra.mxu0 0.0
    %669 = vmatprep.subr.mxu0 0.0
    %670 = vmatpush1.msra.mxu0 0.0
    %671 = vmatprep.subr.mxu0 0.0
    %672 = vmatpush1.msra.mxu0 0.0
    %673 = vmatprep.subr.mxu0 0.0
    %674 = vmatpush1.msra.mxu0 0.0
    %675 = vmatprep.mubr.f32.mxu0 0.0
    %676 = vmatmul.mubr.f32.gmra.mrb[0].mxu0 %v600
    %v677 = vpop.f32.mrb[0].mxu0
    %v678 = vadd.f32 %v598, %v677
    %v679 = vpop.f32.mrb[0].mxu0
    %680 = vmatprep.mubr.f32.mxu0 0.0
    %681 = vmatmul.mubr.f32.gmra.mrb[0].mxu0 %v603
    %v682 = vpop.f32.mrb[0].mxu0
    %v683 = vadd.f32 %v598, %v682
    %v684 = vpop.f32.mrb[0].mxu0
    %685 = vmatprep.mubr.f32.mxu0 0.0
    %686 = vmatmul.mubr.f32.gmra.mrb[0].mxu0 %v606
    %v687 = vpop.f32.mrb[0].mxu0
    %v688 = vadd.f32 %v598, %v687
    %v689 = vpop.f32.mrb[0].mxu0
    %690 = vmatprep.mubr.f32.mxu0 0.0
    %691 = vmatmul.mubr.f32.gmra.mrb[0].mxu0 %v609
    %v692 = vpop.f32.mrb[0].mxu0
    %v693 = vadd.f32 %v598, %v692
    %v694 = vpop.f32.mrb[0].mxu0
    %695 = vdwg.mxu0
    %v696 = vsel %vm80, %v678, 0.0
    %697 = vadd.xlane.f32.xlu0 %v696
    %v698 = vpop.xlane.xlu0 %697
    %v699 = vsel %vm80, %v683, 0.0
    %700 = vadd.xlane.f32.xlu0 %v699
    %v701 = vpop.xlane.xlu0 %700
    %v702 = vsel %vm80, %v688, 0.0
    %703 = vadd.xlane.f32.xlu0 %v702
    %v704 = vpop.xlane.xlu0 %703
    %v705 = vsel %vm80, %v693, 0.0
    %706 = vadd.xlane.f32.xlu0 %v705
    %v707 = vpop.xlane.xlu0 %706
    %v708 = vrcp.pop 32.0
    %v709 = vmul.f32 %v698, %v708
    %v710 = vmul.f32 %v701, %v708
    %v711 = vmul.f32 %v704, %v708
    %v712 = vmul.f32 %v707, %v708
    %v713 = vsub.f32 %v678, %v709
    %v714 = vsub.f32 %v683, %v710
    %v715 = vsub.f32 %v688, %v711
    %v716 = vsub.f32 %v693, %v712
    %v717 = vmul.f32 %v713, %v713
    %v718 = vmul.f32 %v714, %v714
    %v719 = vmul.f32 %v715, %v715
    %v720 = vmul.f32 %v716, %v716
    %v721 = vsel %vm80, %v717, 0.0
    %722 = vadd.xlane.f32.xlu0 %v721
    %v723 = vpop.xlane.xlu0 %722
    %v724 = vsel %vm80, %v718, 0.0
    %725 = vadd.xlane.f32.xlu0 %v724
    %v726 = vpop.xlane.xlu0 %725
    %v727 = vsel %vm80, %v719, 0.0
    %728 = vadd.xlane.f32.xlu0 %v727
    %v729 = vpop.xlane.xlu0 %728
    %v730 = vsel %vm80, %v720, 0.0
    %731 = vadd.xlane.f32.xlu0 %v730
    %v732 = vpop.xlane.xlu0 %731
    %v733 = vmul.f32 %v723, %v708
    %v734 = vmul.f32 %v726, %v708
    %v735 = vmul.f32 %v729, %v708
    %v736 = vmul.f32 %v732, %v708
    %v737 = vadd.f32 %v733, 1e-05
    %v738 = vadd.f32 %v734, 1e-05
    %v739 = vadd.f32 %v735, 1e-05
    %v740 = vadd.f32 %v736, 1e-05
    %v741 = vrsqrt.pop %v737
    %v742 = vrsqrt.pop %v738
    %v743 = vrsqrt.pop %v739
    %v744 = vrsqrt.pop %v740
    %v745 = vmul.f32 %v713, %v741
    %v746 = vmul.f32 %v714, %v742
    %v747 = vmul.f32 %v715, %v743
    %v748 = vmul.f32 %v716, %v744
    %v749 = vlaneseq
    %v750 = vshrl.u32 %v749, 7
    %v751 = vsub.s32 0, %v750
    %v752 = vrot.slane %v55, %v751
    %v753 = vmul.f32 %v745, %v752
    %v754 = vmul.f32 %v746, %v752
    %v755 = vmul.f32 %v747, %v752
    %v756 = vmul.f32 %v748, %v752
    %v757 = vlaneseq
    %v758 = vshrl.u32 %v757, 7
    %v759 = vsub.s32 1, %v758
    %v760 = vrot.slane %v55, %v759
    %v761 = vadd.f32 %v753, %v760
    %v762 = vadd.f32 %v754, %v760
    %v763 = vadd.f32 %v755, %v760
    %v764 = vadd.f32 %v756, %v760
    %v765 = vmax.f32 %v761, 0.0
    %v766 = vmax.f32 %v762, 0.0
    %v767 = vmax.f32 %v763, 0.0
    %v768 = vmax.f32 %v764, 0.0
    %v769 = vpack.c.bf16 %v766, %v765
    %v770 = vpack.c.bf16 %v768, %v767
    %771 = vmatprep.subr.bf16.mxu0 0
    %772 = vmatpush1.bf16.msra.mxu0 %v769
    %773 = vmatprep.subr.bf16.mxu0 0
    %774 = vmatpush1.bf16.msra.mxu0 %v770
    %775 = vmatprep.subr.bf16.mxu0 0
    %776 = vmatpush1.bf16.msra.mxu0 0
    %777 = vmatprep.subr.bf16.mxu0 0
    %778 = vmatpush1.bf16.msra.mxu0 0
    %779 = vmatprep.subr.bf16.mxu0 0
    %780 = vmatpush1.bf16.msra.mxu0 0
    %781 = vmatprep.subr.bf16.mxu0 0
    %782 = vmatpush1.bf16.msra.mxu0 0
    %783 = vmatprep.subr.bf16.mxu0 0
    %784 = vmatpush1.bf16.msra.mxu0 0
    %785 = vmatprep.subr.bf16.mxu0 0
    %786 = vmatpush1.bf16.msra.mxu0 0
    %787 = vmatprep.subr.bf16.mxu0 0
    %788 = vmatpush1.bf16.msra.mxu0 0
    %789 = vmatprep.subr.bf16.mxu0 0
    %790 = vmatpush1.bf16.msra.mxu0 0
    %791 = vmatprep.subr.bf16.mxu0 0
    %792 = vmatpush1.bf16.msra.mxu0 0
    %793 = vmatprep.subr.bf16.mxu0 0
    %794 = vmatpush1.bf16.msra.mxu0 0
    %795 = vmatprep.subr.bf16.mxu0 0
    %796 = vmatpush1.bf16.msra.mxu0 0
    %797 = vmatprep.subr.bf16.mxu0 0
    %798 = vmatpush1.bf16.msra.mxu0 0
    %799 = vmatprep.subr.bf16.mxu0 0
    %800 = vmatpush1.bf16.msra.mxu0 0
    %801 = vmatprep.subr.bf16.mxu0 0
    %802 = vmatpush1.bf16.msra.mxu0 0
    %803 = vmatprep.mubr.bf16.mxu0 0
    %804 = vmatmul.mubr.bf16.gmra.mrb[0].mxu0 %v82
    %v805 = vpop.f32.mrb[0].mxu0
    %v806 = vadd.f32 %v35, %v805
    %v807 = vpop.f32.mrb[0].mxu0
    %v808 = vpop.f32.mrb[0].mxu0
    %v809 = vadd.f32 %v36, %v808
    %v810 = vpop.f32.mrb[0].mxu0
    %811 = vmatprep.mubr.bf16.mxu0 0
    %812 = vmatmul.mubr.bf16.gmra.mrb[0].mxu0 %v85
    %v813 = vpop.f32.mrb[0].mxu0
    %v814 = vadd.f32 %v37, %v813
    %v815 = vpop.f32.mrb[0].mxu0
    %v816 = vpop.f32.mrb[0].mxu0
    %v817 = vadd.f32 %v38, %v816
    %v818 = vpop.f32.mrb[0].mxu0
    %819 = vmatprep.mubr.bf16.mxu0 0
    %820 = vmatmul.mubr.bf16.gmra.mrb[0].mxu0 %v88
    %v821 = vpop.f32.mrb[0].mxu0
    %v822 = vadd.f32 %v39, %v821
    %v823 = vpop.f32.mrb[0].mxu0
    %v824 = vpop.f32.mrb[0].mxu0
    %v825 = vadd.f32 %v40, %v824
    %v826 = vpop.f32.mrb[0].mxu0
    %827 = vmatprep.mubr.bf16.mxu0 0
    %828 = vmatmul.mubr.bf16.gmra.mrb[0].mxu0 %v91
    %v829 = vpop.f32.mrb[0].mxu0
    %v830 = vadd.f32 %v41, %v829
    %v831 = vpop.f32.mrb[0].mxu0
    %v832 = vpop.f32.mrb[0].mxu0
    %v833 = vadd.f32 %v42, %v832
    %v834 = vpop.f32.mrb[0].mxu0
    %835 = vdwg.mxu0
    %v836 = vmax.f32 %v806, 0.0
    %v837 = vmax.f32 %v809, 0.0
    %v838 = vmax.f32 %v814, 0.0
    %v839 = vmax.f32 %v817, 0.0
    %v840 = vmax.f32 %v822, 0.0
    %v841 = vmax.f32 %v825, 0.0
    %v842 = vmax.f32 %v830, 0.0
    %v843 = vmax.f32 %v833, 0.0
    %v844 = vadd.f32 %v836, 1e-07
    %v845 = vadd.f32 %v837, 1e-07
    %v846 = vadd.f32 %v838, 1e-07
    %v847 = vadd.f32 %v839, 1e-07
    %v848 = vadd.f32 %v840, 1e-07
    %v849 = vadd.f32 %v841, 1e-07
    %v850 = vadd.f32 %v842, 1e-07
    %v851 = vadd.f32 %v843, 1e-07
    %v852 = vsel %vm80, %v844, -inf
    %v853 = vsel %vm80, %v845, -inf
    %v854 = vsel %vm80, %v846, -inf
    %v855 = vsel %vm80, %v847, -inf
    %v856 = vsel %vm80, %v848, -inf
    %v857 = vmax.f32 %v852, %v856
    %v858 = vsel %vm80, %v849, -inf
    %v859 = vmax.f32 %v853, %v858
    %v860 = vsel %vm80, %v850, -inf
    %v861 = vmax.f32 %v854, %v860
    %v862 = vsel %vm80, %v851, -inf
    %v863 = vmax.f32 %v855, %v862
    %v864 = vmax.f32 %v857, %v859
    %v865 = vmax.f32 %v861, %v863
    %v866 = vmax.f32 %v864, %v865
    %v867 = vrot.slane %v866, 4
    %v868 = vmax.f32 %v866, %v867
    %v869 = vrot.slane %v868, 2
    %v870 = vmax.f32 %v868, %v869
    %v871 = vrot.slane %v870, 1
    %v872 = vmax.f32 %v870, %v871
    %v873 = vsub.f32 %v844, %v872
    %v874 = vsub.f32 %v845, %v872
    %v875 = vsub.f32 %v846, %v872
    %v876 = vsub.f32 %v847, %v872
    %v877 = vsub.f32 %v848, %v872
    %v878 = vsub.f32 %v849, %v872
    %v879 = vsub.f32 %v850, %v872
    %v880 = vsub.f32 %v851, %v872
    %v881 = vmul.f32 %v873, 1.442695
    %v882 = vpow.pop %v881
    %v883 = vmul.f32 %v874, 1.442695
    %v884 = vpow.pop %v883
    %v885 = vmul.f32 %v875, 1.442695
    %v886 = vpow.pop %v885
    %v887 = vmul.f32 %v876, 1.442695
    %v888 = vpow.pop %v887
    %v889 = vmul.f32 %v877, 1.442695
    %v890 = vpow.pop %v889
    %v891 = vmul.f32 %v878, 1.442695
    %v892 = vpow.pop %v891
    %v893 = vmul.f32 %v879, 1.442695
    %v894 = vpow.pop %v893
    %v895 = vmul.f32 %v880, 1.442695
    %v896 = vpow.pop %v895
    %v897 = vmul.f32 %v882, %v844
    %v898 = vmul.f32 %v884, %v845
    %v899 = vmul.f32 %v886, %v846
    %v900 = vmul.f32 %v888, %v847
    %v901 = vmul.f32 %v890, %v848
    %v902 = vmul.f32 %v892, %v849
    %v903 = vmul.f32 %v894, %v850
    %v904 = vmul.f32 %v896, %v851
    %913 = vrot.lane.b32.xlu0 %v882, 32
    %v914 = vpop.permute.xlu0 %913
    %915 = vrot.lane.b32.xlu0 %v884, 32
    %v916 = vpop.permute.xlu0 %915
    %917 = vrot.lane.b32.xlu0 %v886, 32
    %v918 = vpop.permute.xlu0 %917
    %919 = vrot.lane.b32.xlu0 %v888, 32
    %v920 = vpop.permute.xlu0 %919
    %921 = vrot.lane.b32.xlu0 %v890, 32
    %v922 = vpop.permute.xlu0 %921
    %923 = vrot.lane.b32.xlu0 %v892, 32
    %v924 = vpop.permute.xlu0 %923
    %925 = vrot.lane.b32.xlu0 %v894, 32
    %v926 = vpop.permute.xlu0 %925
    %927 = vrot.lane.b32.xlu0 %v896, 32
    %v928 = vpop.permute.xlu0 %927
    %v937 = vsel %vm80, %v897, %v914
    %v938 = vsel %vm80, %v898, %v916
    %v939 = vsel %vm80, %v899, %v918
    %v940 = vsel %vm80, %v900, %v920
    %v941 = vsel %vm80, %v901, %v922
    %v942 = vsel %vm80, %v902, %v924
    %v943 = vsel %vm80, %v903, %v926
    %v944 = vsel %vm80, %v904, %v928
    %v945 = vpack.c.bf16 %v938, %v937
    %v946 = vpack.c.bf16 %v940, %v939
    %v947 = vpack.c.bf16 %v942, %v941
    %v948 = vpack.c.bf16 %v944, %v943
    %949 = vmatprep.subr.bf16.mxu0 0
    %950 = vmatpush1.bf16.msra.mxu0 %v945
    %951 = vmatprep.subr.bf16.mxu0 0
    %952 = vmatpush1.bf16.msra.mxu0 %v946
    %953 = vmatprep.subr.bf16.mxu0 0
    %954 = vmatpush1.bf16.msra.mxu0 %v947
    %955 = vmatprep.subr.bf16.mxu0 0
    %956 = vmatpush1.bf16.msra.mxu0 %v948
    %957 = vmatprep.subr.bf16.mxu0 0
    %958 = vmatpush1.bf16.msra.mxu0 0
    %959 = vmatprep.subr.bf16.mxu0 0
    %960 = vmatpush1.bf16.msra.mxu0 0
    %961 = vmatprep.subr.bf16.mxu0 0
    %962 = vmatpush1.bf16.msra.mxu0 0
    %963 = vmatprep.subr.bf16.mxu0 0
    %964 = vmatpush1.bf16.msra.mxu0 0
    %965 = vmatprep.subr.bf16.mxu0 0
    %966 = vmatpush1.bf16.msra.mxu0 0
    %967 = vmatprep.subr.bf16.mxu0 0
    %968 = vmatpush1.bf16.msra.mxu0 0
    %969 = vmatprep.subr.bf16.mxu0 0
    %970 = vmatpush1.bf16.msra.mxu0 0
    %971 = vmatprep.subr.bf16.mxu0 0
    %972 = vmatpush1.bf16.msra.mxu0 0
    %973 = vmatprep.subr.bf16.mxu0 0
    %974 = vmatpush1.bf16.msra.mxu0 0
    %975 = vmatprep.subr.bf16.mxu0 0
    %976 = vmatpush1.bf16.msra.mxu0 0
    %977 = vmatprep.subr.bf16.mxu0 0
    %978 = vmatpush1.bf16.msra.mxu0 0
    %979 = vmatprep.subr.bf16.mxu0 0
    %980 = vmatpush1.bf16.msra.mxu0 0
    %981 = vmatprep.mubr.bf16.mxu0 0
    %982 = vmatmul.mubr.bf16.gmra.mrb[0].mxu0 %v283
    %v983 = vpop.f32.mrb[0].mxu0
    %v984 = vadd.f32 0.0, %v983
    %v985 = vpop.f32.mrb[0].mxu0
    %v986 = vpop.f32.mrb[0].mxu0
    %v987 = vadd.f32 0.0, %v986
    %v988 = vpop.f32.mrb[0].mxu0
    %989 = vmatprep.mubr.bf16.mxu0 0
    %990 = vmatmul.mubr.bf16.gmra.mrb[0].mxu0 %v286
    %v991 = vpop.f32.mrb[0].mxu0
    %v992 = vadd.f32 0.0, %v991
    %v993 = vpop.f32.mrb[0].mxu0
    %v994 = vpop.f32.mrb[0].mxu0
    %v995 = vadd.f32 0.0, %v994
    %v996 = vpop.f32.mrb[0].mxu0
    %997 = vdwg.mxu0
    %vm998 = vcmp.gt.f32.partialorder %v984, 0.0
    %vm999 = vcmp.gt.f32.partialorder %v987, 0.0
    %vm1000 = vcmp.gt.f32.partialorder %v992, 0.0
    %vm1001 = vcmp.gt.f32.partialorder %v995, 0.0
    %v1002 = vsel %vm998, %v984, 1.0
    %v1003 = vsel %vm999, %v987, 1.0
    %v1004 = vsel %vm1000, %v992, 1.0
    %v1005 = vsel %vm1001, %v995, 1.0
    %v1006 = vrcp.pop %v1002
    %v1007 = vrcp.pop %v1003
    %v1008 = vrcp.pop %v1004
    %v1009 = vrcp.pop %v1005
    %1014 = vrot.lane.b32.xlu0 %v1006, 96
    %v1015 = vpop.permute.xlu0 %1014
    %1016 = vrot.lane.b32.xlu0 %v1007, 96
    %v1017 = vpop.permute.xlu0 %1016
    %1018 = vrot.lane.b32.xlu0 %v1008, 96
    %v1019 = vpop.permute.xlu0 %1018
    %1020 = vrot.lane.b32.xlu0 %v1009, 96
    %v1021 = vpop.permute.xlu0 %1020
    %v1026 = vmul.f32 %v984, %v1015
    %v1027 = vmul.f32 %v987, %v1017
    %v1028 = vmul.f32 %v992, %v1019
    %v1029 = vmul.f32 %v995, %v1021
    %1034 = vrot.lane.b32.xlu0 %v1026, 32
    %v1035 = vpop.permute.xlu0 %1034
    %1036 = vrot.lane.b32.xlu0 %v1027, 32
    %v1037 = vpop.permute.xlu0 %1036
    %1038 = vrot.lane.b32.xlu0 %v1028, 32
    %v1039 = vpop.permute.xlu0 %1038
    %1040 = vrot.lane.b32.xlu0 %v1029, 32
    %v1041 = vpop.permute.xlu0 %1040
    %v1046 = vsel %vm998, %v1035, 0.0
    %v1047 = vsel %vm999, %v1037, 0.0
    %v1048 = vsel %vm1000, %v1039, 0.0
    %v1049 = vsel %vm1001, %v1041, 0.0
    %1054 = vrot.lane.b32.xlu0 %v1046, 96
    %v1055 = vpop.permute.xlu0 %1054
    %1056 = vrot.lane.b32.xlu0 %v1047, 96
    %v1057 = vpop.permute.xlu0 %1056
    %1058 = vrot.lane.b32.xlu0 %v1048, 96
    %v1059 = vpop.permute.xlu0 %1058
    %1060 = vrot.lane.b32.xlu0 %v1049, 96
    %v1061 = vpop.permute.xlu0 %1060
    %v1066 = vadd.f32 %v765, %v1055
    %v1067 = vadd.f32 %v766, %v1057
    %v1068 = vadd.f32 %v767, %v1059
    %v1069 = vadd.f32 %v768, %v1061
    %s1070 = scalar_lea.vmem %s4, 32
    %v1071 = vld [vmem:[%s1070] sm:$0xff]
    %v1072 = vld [vmem:[%s1070 + $0x8] sm:$0xff]
    %v1073 = vld [vmem:[%s1070 + $0x10] sm:$0xff]
    %v1074 = vld [vmem:[%s1070 + $0x18] sm:$0xff]
    %v1075 = vlaneseq
    %v1076 = vshrl.u32 %v1075, 7
    %v1077 = vsub.s32 0, %v1076
    %v1078 = vrot.slane %v56, %v1077
    %v1080 = vsel %vm80, %v1066, 0
    %v1083 = vsel %vm80, %v1067, 0
    %v1086 = vsel %vm80, %v1068, 0
    %v1089 = vsel %vm80, %v1069, 0
    %1091 = vmatprep.subr.mxu0 0.0
    %1092 = vmatpush1.msra.mxu0 %v1071
    %1093 = vmatprep.subr.mxu0 0.0
    %1094 = vmatpush1.msra.mxu0 %v1072
    %1095 = vmatprep.subr.mxu0 0.0
    %1096 = vmatpush1.msra.mxu0 %v1073
    %1097 = vmatprep.subr.mxu0 0.0
    %1098 = vmatpush1.msra.mxu0 %v1074
    %1099 = vmatprep.subr.mxu0 0.0
    %1100 = vmatpush1.msra.mxu0 0.0
    %1101 = vmatprep.subr.mxu0 0.0
    %1102 = vmatpush1.msra.mxu0 0.0
    %1103 = vmatprep.subr.mxu0 0.0
    %1104 = vmatpush1.msra.mxu0 0.0
    %1105 = vmatprep.subr.mxu0 0.0
    %1106 = vmatpush1.msra.mxu0 0.0
    %1107 = vmatprep.subr.mxu0 0.0
    %1108 = vmatpush1.msra.mxu0 0.0
    %1109 = vmatprep.subr.mxu0 0.0
    %1110 = vmatpush1.msra.mxu0 0.0
    %1111 = vmatprep.subr.mxu0 0.0
    %1112 = vmatpush1.msra.mxu0 0.0
    %1113 = vmatprep.subr.mxu0 0.0
    %1114 = vmatpush1.msra.mxu0 0.0
    %1115 = vmatprep.subr.mxu0 0.0
    %1116 = vmatpush1.msra.mxu0 0.0
    %1117 = vmatprep.subr.mxu0 0.0
    %1118 = vmatpush1.msra.mxu0 0.0
    %1119 = vmatprep.subr.mxu0 0.0
    %1120 = vmatpush1.msra.mxu0 0.0
    %1121 = vmatprep.subr.mxu0 0.0
    %1122 = vmatpush1.msra.mxu0 0.0
    %1123 = vmatprep.subr.mxu0 0.0
    %1124 = vmatpush1.msra.mxu0 0.0
    %1125 = vmatprep.subr.mxu0 0.0
    %1126 = vmatpush1.msra.mxu0 0.0
    %1127 = vmatprep.subr.mxu0 0.0
    %1128 = vmatpush1.msra.mxu0 0.0
    %1129 = vmatprep.subr.mxu0 0.0
    %1130 = vmatpush1.msra.mxu0 0.0
    %1131 = vmatprep.subr.mxu0 0.0
    %1132 = vmatpush1.msra.mxu0 0.0
    %1133 = vmatprep.subr.mxu0 0.0
    %1134 = vmatpush1.msra.mxu0 0.0
    %1135 = vmatprep.subr.mxu0 0.0
    %1136 = vmatpush1.msra.mxu0 0.0
    %1137 = vmatprep.subr.mxu0 0.0
    %1138 = vmatpush1.msra.mxu0 0.0
    %1139 = vmatprep.subr.mxu0 0.0
    %1140 = vmatpush1.msra.mxu0 0.0
    %1141 = vmatprep.subr.mxu0 0.0
    %1142 = vmatpush1.msra.mxu0 0.0
    %1143 = vmatprep.subr.mxu0 0.0
    %1144 = vmatpush1.msra.mxu0 0.0
    %1145 = vmatprep.subr.mxu0 0.0
    %1146 = vmatpush1.msra.mxu0 0.0
    %1147 = vmatprep.subr.mxu0 0.0
    %1148 = vmatpush1.msra.mxu0 0.0
    %1149 = vmatprep.subr.mxu0 0.0
    %1150 = vmatpush1.msra.mxu0 0.0
    %1151 = vmatprep.subr.mxu0 0.0
    %1152 = vmatpush1.msra.mxu0 0.0
    %1153 = vmatprep.subr.mxu0 0.0
    %1154 = vmatpush1.msra.mxu0 0.0
    %1155 = vmatprep.mubr.f32.mxu0 0.0
    %1156 = vmatmul.mubr.f32.gmra.mrb[0].mxu0 %v1080
    %v1157 = vpop.f32.mrb[0].mxu0
    %v1158 = vadd.f32 %v1078, %v1157
    %v1159 = vpop.f32.mrb[0].mxu0
    %1160 = vmatprep.mubr.f32.mxu0 0.0
    %1161 = vmatmul.mubr.f32.gmra.mrb[0].mxu0 %v1083
    %v1162 = vpop.f32.mrb[0].mxu0
    %v1163 = vadd.f32 %v1078, %v1162
    %v1164 = vpop.f32.mrb[0].mxu0
    %1165 = vmatprep.mubr.f32.mxu0 0.0
    %1166 = vmatmul.mubr.f32.gmra.mrb[0].mxu0 %v1086
    %v1167 = vpop.f32.mrb[0].mxu0
    %v1168 = vadd.f32 %v1078, %v1167
    %v1169 = vpop.f32.mrb[0].mxu0
    %1170 = vmatprep.mubr.f32.mxu0 0.0
    %1171 = vmatmul.mubr.f32.gmra.mrb[0].mxu0 %v1089
    %v1172 = vpop.f32.mrb[0].mxu0
    %v1173 = vadd.f32 %v1078, %v1172
    %v1174 = vpop.f32.mrb[0].mxu0
    %1175 = vdwg.mxu0
    %v1176 = vsel %vm281, %v1158, 0.0
    %1177 = vadd.xlane.f32.xlu0 %v1176
    %v1178 = vpop.xlane.xlu0 %1177
    %v1179 = vsel %vm281, %v1163, 0.0
    %1180 = vadd.xlane.f32.xlu0 %v1179
    %v1181 = vpop.xlane.xlu0 %1180
    %v1182 = vsel %vm281, %v1168, 0.0
    %1183 = vadd.xlane.f32.xlu0 %v1182
    %v1184 = vpop.xlane.xlu0 %1183
    %v1185 = vsel %vm281, %v1173, 0.0
    %1186 = vadd.xlane.f32.xlu0 %v1185
    %v1187 = vpop.xlane.xlu0 %1186
    %v1188 = vmul.f32 %v1178, %v526
    %v1189 = vmul.f32 %v1181, %v526
    %v1190 = vmul.f32 %v1184, %v526
    %v1191 = vmul.f32 %v1187, %v526
    %v1192 = vsub.f32 %v1158, %v1188
    %v1193 = vsub.f32 %v1163, %v1189
    %v1194 = vsub.f32 %v1168, %v1190
    %v1195 = vsub.f32 %v1173, %v1191
    %v1196 = vmul.f32 %v1192, %v1192
    %v1197 = vmul.f32 %v1193, %v1193
    %v1198 = vmul.f32 %v1194, %v1194
    %v1199 = vmul.f32 %v1195, %v1195
    %v1200 = vsel %vm281, %v1196, 0.0
    %1201 = vadd.xlane.f32.xlu0 %v1200
    %v1202 = vpop.xlane.xlu0 %1201
    %v1203 = vsel %vm281, %v1197, 0.0
    %1204 = vadd.xlane.f32.xlu0 %v1203
    %v1205 = vpop.xlane.xlu0 %1204
    %v1206 = vsel %vm281, %v1198, 0.0
    %1207 = vadd.xlane.f32.xlu0 %v1206
    %v1208 = vpop.xlane.xlu0 %1207
    %v1209 = vsel %vm281, %v1199, 0.0
    %1210 = vadd.xlane.f32.xlu0 %v1209
    %v1211 = vpop.xlane.xlu0 %1210
    %v1212 = vmul.f32 %v1202, %v526
    %v1213 = vmul.f32 %v1205, %v526
    %v1214 = vmul.f32 %v1208, %v526
    %v1215 = vmul.f32 %v1211, %v526
    %v1216 = vadd.f32 %v1212, 1e-05
    %v1217 = vadd.f32 %v1213, 1e-05
    %v1218 = vadd.f32 %v1214, 1e-05
    %v1219 = vadd.f32 %v1215, 1e-05
    %v1220 = vrsqrt.pop %v1216
    %v1221 = vrsqrt.pop %v1217
    %v1222 = vrsqrt.pop %v1218
    %v1223 = vrsqrt.pop %v1219
    %v1224 = vmul.f32 %v1192, %v1220
    %v1225 = vmul.f32 %v1193, %v1221
    %v1226 = vmul.f32 %v1194, %v1222
    %v1227 = vmul.f32 %v1195, %v1223
    %v1228 = vlaneseq
    %v1229 = vshrl.u32 %v1228, 7
    %v1230 = vsub.s32 1, %v1229
    %v1231 = vrot.slane %v56, %v1230
    %v1232 = vmul.f32 %v1224, %v1231
    %v1233 = vmul.f32 %v1225, %v1231
    %v1234 = vmul.f32 %v1226, %v1231
    %v1235 = vmul.f32 %v1227, %v1231
    %v1236 = vlaneseq
    %v1237 = vshrl.u32 %v1236, 7
    %v1238 = vsub.s32 2, %v1237
    %v1239 = vrot.slane %v56, %v1238
    %v1240 = vadd.f32 %v1232, %v1239
    %v1241 = vadd.f32 %v1233, %v1239
    %v1242 = vadd.f32 %v1234, %v1239
    %v1243 = vadd.f32 %v1235, %v1239
    %v1244 = vmax.f32 %v1240, 0.0
    %v1245 = vmax.f32 %v1241, 0.0
    %v1246 = vmax.f32 %v1242, 0.0
    %v1247 = vmax.f32 %v1243, 0.0
    %s1248 = scalar_lea.vmem %s5, 64
    %v1249 = vld [vmem:[%s1248] sm:$0xff]
    %v1250 = vld [vmem:[%s1248 + $0x8] sm:$0xff]
    %v1251 = vld [vmem:[%s1248 + $0x10] sm:$0xff]
    %v1252 = vld [vmem:[%s1248 + $0x18] sm:$0xff]
    %v1253 = vld [vmem:[%s1248 + $0x20] sm:$0xff]
    %v1254 = vld [vmem:[%s1248 + $0x28] sm:$0xff]
    %v1255 = vld [vmem:[%s1248 + $0x30] sm:$0xff]
    %v1256 = vld [vmem:[%s1248 + $0x38] sm:$0xff]
    %v1257 = vlaneseq
    %v1258 = vshrl.u32 %v1257, 7
    %v1259 = vsub.s32 3, %v1258
    %v1260 = vrot.slane %v56, %v1259
    %v1262 = vsel %vm281, %v1244, 0
    %v1265 = vsel %vm281, %v1245, 0
    %v1268 = vsel %vm281, %v1246, 0
    %v1271 = vsel %vm281, %v1247, 0
    %1273 = vmatprep.subr.mxu0 0.0
    %1274 = vmatpush1.msra.mxu0 %v1249
    %1275 = vmatprep.subr.mxu0 0.0
    %1276 = vmatpush1.msra.mxu0 %v1250
    %1277 = vmatprep.subr.mxu0 0.0
    %1278 = vmatpush1.msra.mxu0 %v1251
    %1279 = vmatprep.subr.mxu0 0.0
    %1280 = vmatpush1.msra.mxu0 %v1252
    %1281 = vmatprep.subr.mxu0 0.0
    %1282 = vmatpush1.msra.mxu0 %v1253
    %1283 = vmatprep.subr.mxu0 0.0
    %1284 = vmatpush1.msra.mxu0 %v1254
    %1285 = vmatprep.subr.mxu0 0.0
    %1286 = vmatpush1.msra.mxu0 %v1255
    %1287 = vmatprep.subr.mxu0 0.0
    %1288 = vmatpush1.msra.mxu0 %v1256
    %1289 = vmatprep.subr.mxu0 0.0
    %1290 = vmatpush1.msra.mxu0 0.0
    %1291 = vmatprep.subr.mxu0 0.0
    %1292 = vmatpush1.msra.mxu0 0.0
    %1293 = vmatprep.subr.mxu0 0.0
    %1294 = vmatpush1.msra.mxu0 0.0
    %1295 = vmatprep.subr.mxu0 0.0
    %1296 = vmatpush1.msra.mxu0 0.0
    %1297 = vmatprep.subr.mxu0 0.0
    %1298 = vmatpush1.msra.mxu0 0.0
    %1299 = vmatprep.subr.mxu0 0.0
    %1300 = vmatpush1.msra.mxu0 0.0
    %1301 = vmatprep.subr.mxu0 0.0
    %1302 = vmatpush1.msra.mxu0 0.0
    %1303 = vmatprep.subr.mxu0 0.0
    %1304 = vmatpush1.msra.mxu0 0.0
    %1305 = vmatprep.subr.mxu0 0.0
    %1306 = vmatpush1.msra.mxu0 0.0
    %1307 = vmatprep.subr.mxu0 0.0
    %1308 = vmatpush1.msra.mxu0 0.0
    %1309 = vmatprep.subr.mxu0 0.0
    %1310 = vmatpush1.msra.mxu0 0.0
    %1311 = vmatprep.subr.mxu0 0.0
    %1312 = vmatpush1.msra.mxu0 0.0
    %1313 = vmatprep.subr.mxu0 0.0
    %1314 = vmatpush1.msra.mxu0 0.0
    %1315 = vmatprep.subr.mxu0 0.0
    %1316 = vmatpush1.msra.mxu0 0.0
    %1317 = vmatprep.subr.mxu0 0.0
    %1318 = vmatpush1.msra.mxu0 0.0
    %1319 = vmatprep.subr.mxu0 0.0
    %1320 = vmatpush1.msra.mxu0 0.0
    %1321 = vmatprep.subr.mxu0 0.0
    %1322 = vmatpush1.msra.mxu0 0.0
    %1323 = vmatprep.subr.mxu0 0.0
    %1324 = vmatpush1.msra.mxu0 0.0
    %1325 = vmatprep.subr.mxu0 0.0
    %1326 = vmatpush1.msra.mxu0 0.0
    %1327 = vmatprep.subr.mxu0 0.0
    %1328 = vmatpush1.msra.mxu0 0.0
    %1329 = vmatprep.subr.mxu0 0.0
    %1330 = vmatpush1.msra.mxu0 0.0
    %1331 = vmatprep.subr.mxu0 0.0
    %1332 = vmatpush1.msra.mxu0 0.0
    %1333 = vmatprep.subr.mxu0 0.0
    %1334 = vmatpush1.msra.mxu0 0.0
    %1335 = vmatprep.subr.mxu0 0.0
    %1336 = vmatpush1.msra.mxu0 0.0
    %1337 = vmatprep.mubr.f32.mxu0 0.0
    %1338 = vmatmul.mubr.f32.gmra.mrb[0].mxu0 %v1262
    %v1339 = vpop.f32.mrb[0].mxu0
    %v1340 = vadd.f32 %v1260, %v1339
    %v1341 = vpop.f32.mrb[0].mxu0
    %1342 = vmatprep.mubr.f32.mxu0 0.0
    %1343 = vmatmul.mubr.f32.gmra.mrb[0].mxu0 %v1265
    %v1344 = vpop.f32.mrb[0].mxu0
    %v1345 = vadd.f32 %v1260, %v1344
    %v1346 = vpop.f32.mrb[0].mxu0
    %1347 = vmatprep.mubr.f32.mxu0 0.0
    %1348 = vmatmul.mubr.f32.gmra.mrb[0].mxu0 %v1268
    %v1349 = vpop.f32.mrb[0].mxu0
    %v1350 = vadd.f32 %v1260, %v1349
    %v1351 = vpop.f32.mrb[0].mxu0
    %1352 = vmatprep.mubr.f32.mxu0 0.0
    %1353 = vmatmul.mubr.f32.gmra.mrb[0].mxu0 %v1271
    %v1354 = vpop.f32.mrb[0].mxu0
    %v1355 = vadd.f32 %v1260, %v1354
    %v1356 = vpop.f32.mrb[0].mxu0
    %1357 = vdwg.mxu0
    %v1358 = vadd.f32 %v1340, %v678
    %v1359 = vadd.f32 %v1345, %v683
    %v1360 = vadd.f32 %v1350, %v688
    %v1361 = vadd.f32 %v1355, %v693
    %v1362 = vsel %vm80, %v1358, 0.0
    %1363 = vadd.xlane.f32.xlu0 %v1362
    %v1364 = vpop.xlane.xlu0 %1363
    %v1365 = vsel %vm80, %v1359, 0.0
    %1366 = vadd.xlane.f32.xlu0 %v1365
    %v1367 = vpop.xlane.xlu0 %1366
    %v1368 = vsel %vm80, %v1360, 0.0
    %1369 = vadd.xlane.f32.xlu0 %v1368
    %v1370 = vpop.xlane.xlu0 %1369
    %v1371 = vsel %vm80, %v1361, 0.0
    %1372 = vadd.xlane.f32.xlu0 %v1371
    %v1373 = vpop.xlane.xlu0 %1372
    %v1374 = vmul.f32 %v1364, %v708
    %v1375 = vmul.f32 %v1367, %v708
    %v1376 = vmul.f32 %v1370, %v708
    %v1377 = vmul.f32 %v1373, %v708
    %v1378 = vsub.f32 %v1358, %v1374
    %v1379 = vsub.f32 %v1359, %v1375
    %v1380 = vsub.f32 %v1360, %v1376
    %v1381 = vsub.f32 %v1361, %v1377
    %v1382 = vmul.f32 %v1378, %v1378
    %v1383 = vmul.f32 %v1379, %v1379
    %v1384 = vmul.f32 %v1380, %v1380
    %v1385 = vmul.f32 %v1381, %v1381
    %v1386 = vsel %vm80, %v1382, 0.0
    %1387 = vadd.xlane.f32.xlu0 %v1386
    %v1388 = vpop.xlane.xlu0 %1387
    %v1389 = vsel %vm80, %v1383, 0.0
    %1390 = vadd.xlane.f32.xlu0 %v1389
    %v1391 = vpop.xlane.xlu0 %1390
    %v1392 = vsel %vm80, %v1384, 0.0
    %1393 = vadd.xlane.f32.xlu0 %v1392
    %v1394 = vpop.xlane.xlu0 %1393
    %v1395 = vsel %vm80, %v1385, 0.0
    %1396 = vadd.xlane.f32.xlu0 %v1395
    %v1397 = vpop.xlane.xlu0 %1396
    %v1398 = vmul.f32 %v1388, %v708
    %v1399 = vmul.f32 %v1391, %v708
    %v1400 = vmul.f32 %v1394, %v708
    %v1401 = vmul.f32 %v1397, %v708
    %v1402 = vadd.f32 %v1398, 1e-05
    %v1403 = vadd.f32 %v1399, 1e-05
    %v1404 = vadd.f32 %v1400, 1e-05
    %v1405 = vadd.f32 %v1401, 1e-05
    %v1406 = vrsqrt.pop %v1402
    %v1407 = vrsqrt.pop %v1403
    %v1408 = vrsqrt.pop %v1404
    %v1409 = vrsqrt.pop %v1405
    %v1410 = vmul.f32 %v1378, %v1406
    %v1411 = vmul.f32 %v1379, %v1407
    %v1412 = vmul.f32 %v1380, %v1408
    %v1413 = vmul.f32 %v1381, %v1409
    %v1414 = vlaneseq
    %v1415 = vshrl.u32 %v1414, 7
    %v1416 = vsub.s32 6, %v1415
    %v1417 = vrot.slane %v55, %v1416
    %v1418 = vmul.f32 %v1410, %v1417
    %v1419 = vmul.f32 %v1411, %v1417
    %v1420 = vmul.f32 %v1412, %v1417
    %v1421 = vmul.f32 %v1413, %v1417
    %v1422 = vlaneseq
    %v1423 = vshrl.u32 %v1422, 7
    %v1424 = vsub.s32 7, %v1423
    %v1425 = vrot.slane %v55, %v1424
    %v1426 = vadd.f32 %v1418, %v1425
    %v1427 = vadd.f32 %v1419, %v1425
    %v1428 = vadd.f32 %v1420, %v1425
    %v1429 = vadd.f32 %v1421, %v1425
    %v1430 = vmax.f32 %v1426, 0.0
    %v1431 = vmax.f32 %v1427, 0.0
    %v1432 = vmax.f32 %v1428, 0.0
    %v1433 = vmax.f32 %v1429, 0.0
    %v1434 = vpack.c.bf16 %v1431, %v1430
    %v1435 = vpack.c.bf16 %v1433, %v1432
    %1436 = vmatprep.subr.bf16.mxu0 0
    %1437 = vmatpush1.bf16.msra.mxu0 %v1434
    %1438 = vmatprep.subr.bf16.mxu0 0
    %1439 = vmatpush1.bf16.msra.mxu0 %v1435
    %1440 = vmatprep.subr.bf16.mxu0 0
    %1441 = vmatpush1.bf16.msra.mxu0 0
    %1442 = vmatprep.subr.bf16.mxu0 0
    %1443 = vmatpush1.bf16.msra.mxu0 0
    %1444 = vmatprep.subr.bf16.mxu0 0
    %1445 = vmatpush1.bf16.msra.mxu0 0
    %1446 = vmatprep.subr.bf16.mxu0 0
    %1447 = vmatpush1.bf16.msra.mxu0 0
    %1448 = vmatprep.subr.bf16.mxu0 0
    %1449 = vmatpush1.bf16.msra.mxu0 0
    %1450 = vmatprep.subr.bf16.mxu0 0
    %1451 = vmatpush1.bf16.msra.mxu0 0
    %1452 = vmatprep.subr.bf16.mxu0 0
    %1453 = vmatpush1.bf16.msra.mxu0 0
    %1454 = vmatprep.subr.bf16.mxu0 0
    %1455 = vmatpush1.bf16.msra.mxu0 0
    %1456 = vmatprep.subr.bf16.mxu0 0
    %1457 = vmatpush1.bf16.msra.mxu0 0
    %1458 = vmatprep.subr.bf16.mxu0 0
    %1459 = vmatpush1.bf16.msra.mxu0 0
    %1460 = vmatprep.subr.bf16.mxu0 0
    %1461 = vmatpush1.bf16.msra.mxu0 0
    %1462 = vmatprep.subr.bf16.mxu0 0
    %1463 = vmatpush1.bf16.msra.mxu0 0
    %1464 = vmatprep.subr.bf16.mxu0 0
    %1465 = vmatpush1.bf16.msra.mxu0 0
    %1466 = vmatprep.subr.bf16.mxu0 0
    %1467 = vmatpush1.bf16.msra.mxu0 0
    %1468 = vmatprep.mubr.bf16.mxu0 0
    %1469 = vmatmul.mubr.bf16.gmra.mrb[0].mxu0 %v82
    %v1470 = vpop.f32.mrb[0].mxu0
    %v1471 = vadd.f32 %v35, %v1470
    %v1472 = vpop.f32.mrb[0].mxu0
    %v1473 = vpop.f32.mrb[0].mxu0
    %v1474 = vadd.f32 %v36, %v1473
    %v1475 = vpop.f32.mrb[0].mxu0
    %1476 = vmatprep.mubr.bf16.mxu0 0
    %1477 = vmatmul.mubr.bf16.gmra.mrb[0].mxu0 %v85
    %v1478 = vpop.f32.mrb[0].mxu0
    %v1479 = vadd.f32 %v37, %v1478
    %v1480 = vpop.f32.mrb[0].mxu0
    %v1481 = vpop.f32.mrb[0].mxu0
    %v1482 = vadd.f32 %v38, %v1481
    %v1483 = vpop.f32.mrb[0].mxu0
    %1484 = vmatprep.mubr.bf16.mxu0 0
    %1485 = vmatmul.mubr.bf16.gmra.mrb[0].mxu0 %v88
    %v1486 = vpop.f32.mrb[0].mxu0
    %v1487 = vadd.f32 %v39, %v1486
    %v1488 = vpop.f32.mrb[0].mxu0
    %v1489 = vpop.f32.mrb[0].mxu0
    %v1490 = vadd.f32 %v40, %v1489
    %v1491 = vpop.f32.mrb[0].mxu0
    %1492 = vmatprep.mubr.bf16.mxu0 0
    %1493 = vmatmul.mubr.bf16.gmra.mrb[0].mxu0 %v91
    %v1494 = vpop.f32.mrb[0].mxu0
    %v1495 = vadd.f32 %v41, %v1494
    %v1496 = vpop.f32.mrb[0].mxu0
    %v1497 = vpop.f32.mrb[0].mxu0
    %v1498 = vadd.f32 %v42, %v1497
    %v1499 = vpop.f32.mrb[0].mxu0
    %1500 = vdwg.mxu0
    %v1501 = vmax.f32 %v1471, 0.0
    %v1502 = vmax.f32 %v1474, 0.0
    %v1503 = vmax.f32 %v1479, 0.0
    %v1504 = vmax.f32 %v1482, 0.0
    %v1505 = vmax.f32 %v1487, 0.0
    %v1506 = vmax.f32 %v1490, 0.0
    %v1507 = vmax.f32 %v1495, 0.0
    %v1508 = vmax.f32 %v1498, 0.0
    %v1509 = vadd.f32 %v1501, 1e-07
    %v1510 = vadd.f32 %v1502, 1e-07
    %v1511 = vadd.f32 %v1503, 1e-07
    %v1512 = vadd.f32 %v1504, 1e-07
    %v1513 = vadd.f32 %v1505, 1e-07
    %v1514 = vadd.f32 %v1506, 1e-07
    %v1515 = vadd.f32 %v1507, 1e-07
    %v1516 = vadd.f32 %v1508, 1e-07
    %v1517 = vsel %vm80, %v1509, -inf
    %v1518 = vsel %vm80, %v1510, -inf
    %v1519 = vsel %vm80, %v1511, -inf
    %v1520 = vsel %vm80, %v1512, -inf
    %v1521 = vsel %vm80, %v1513, -inf
    %v1522 = vmax.f32 %v1517, %v1521
    %v1523 = vsel %vm80, %v1514, -inf
    %v1524 = vmax.f32 %v1518, %v1523
    %v1525 = vsel %vm80, %v1515, -inf
    %v1526 = vmax.f32 %v1519, %v1525
    %v1527 = vsel %vm80, %v1516, -inf
    %v1528 = vmax.f32 %v1520, %v1527
    %v1529 = vmax.f32 %v1522, %v1524
    %v1530 = vmax.f32 %v1526, %v1528
    %v1531 = vmax.f32 %v1529, %v1530
    %v1532 = vrot.slane %v1531, 4
    %v1533 = vmax.f32 %v1531, %v1532
    %v1534 = vrot.slane %v1533, 2
    %v1535 = vmax.f32 %v1533, %v1534
    %v1536 = vrot.slane %v1535, 1
    %v1537 = vmax.f32 %v1535, %v1536
    %v1538 = vsub.f32 %v1509, %v1537
    %v1539 = vsub.f32 %v1510, %v1537
    %v1540 = vsub.f32 %v1511, %v1537
    %v1541 = vsub.f32 %v1512, %v1537
    %v1542 = vsub.f32 %v1513, %v1537
    %v1543 = vsub.f32 %v1514, %v1537
    %v1544 = vsub.f32 %v1515, %v1537
    %v1545 = vsub.f32 %v1516, %v1537
    %v1546 = vmul.f32 %v1538, 1.442695
    %v1547 = vpow.pop %v1546
    %v1548 = vmul.f32 %v1539, 1.442695
    %v1549 = vpow.pop %v1548
    %v1550 = vmul.f32 %v1540, 1.442695
    %v1551 = vpow.pop %v1550
    %v1552 = vmul.f32 %v1541, 1.442695
    %v1553 = vpow.pop %v1552
    %v1554 = vmul.f32 %v1542, 1.442695
    %v1555 = vpow.pop %v1554
    %v1556 = vmul.f32 %v1543, 1.442695
    %v1557 = vpow.pop %v1556
    %v1558 = vmul.f32 %v1544, 1.442695
    %v1559 = vpow.pop %v1558
    %v1560 = vmul.f32 %v1545, 1.442695
    %v1561 = vpow.pop %v1560
    %v1562 = vmul.f32 %v1547, %v1509
    %v1563 = vmul.f32 %v1549, %v1510
    %v1564 = vmul.f32 %v1551, %v1511
    %v1565 = vmul.f32 %v1553, %v1512
    %v1566 = vmul.f32 %v1555, %v1513
    %v1567 = vmul.f32 %v1557, %v1514
    %v1568 = vmul.f32 %v1559, %v1515
    %v1569 = vmul.f32 %v1561, %v1516
    %1578 = vrot.lane.b32.xlu0 %v1547, 32
    %v1579 = vpop.permute.xlu0 %1578
    %1580 = vrot.lane.b32.xlu0 %v1549, 32
    %v1581 = vpop.permute.xlu0 %1580
    %1582 = vrot.lane.b32.xlu0 %v1551, 32
    %v1583 = vpop.permute.xlu0 %1582
    %1584 = vrot.lane.b32.xlu0 %v1553, 32
    %v1585 = vpop.permute.xlu0 %1584
    %1586 = vrot.lane.b32.xlu0 %v1555, 32
    %v1587 = vpop.permute.xlu0 %1586
    %1588 = vrot.lane.b32.xlu0 %v1557, 32
    %v1589 = vpop.permute.xlu0 %1588
    %1590 = vrot.lane.b32.xlu0 %v1559, 32
    %v1591 = vpop.permute.xlu0 %1590
    %1592 = vrot.lane.b32.xlu0 %v1561, 32
    %v1593 = vpop.permute.xlu0 %1592
    %v1602 = vsel %vm80, %v1562, %v1579
    %v1603 = vsel %vm80, %v1563, %v1581
    %v1604 = vsel %vm80, %v1564, %v1583
    %v1605 = vsel %vm80, %v1565, %v1585
    %v1606 = vsel %vm80, %v1566, %v1587
    %v1607 = vsel %vm80, %v1567, %v1589
    %v1608 = vsel %vm80, %v1568, %v1591
    %v1609 = vsel %vm80, %v1569, %v1593
    %v1610 = vpack.c.bf16 %v1603, %v1602
    %v1611 = vpack.c.bf16 %v1605, %v1604
    %v1612 = vpack.c.bf16 %v1607, %v1606
    %v1613 = vpack.c.bf16 %v1609, %v1608
    %1614 = vmatprep.subr.bf16.mxu0 0
    %1615 = vmatpush1.bf16.msra.mxu0 %v1610
    %1616 = vmatprep.subr.bf16.mxu0 0
    %1617 = vmatpush1.bf16.msra.mxu0 %v1611
    %1618 = vmatprep.subr.bf16.mxu0 0
    %1619 = vmatpush1.bf16.msra.mxu0 %v1612
    %1620 = vmatprep.subr.bf16.mxu0 0
    %1621 = vmatpush1.bf16.msra.mxu0 %v1613
    %1622 = vmatprep.subr.bf16.mxu0 0
    %1623 = vmatpush1.bf16.msra.mxu0 0
    %1624 = vmatprep.subr.bf16.mxu0 0
    %1625 = vmatpush1.bf16.msra.mxu0 0
    %1626 = vmatprep.subr.bf16.mxu0 0
    %1627 = vmatpush1.bf16.msra.mxu0 0
    %1628 = vmatprep.subr.bf16.mxu0 0
    %1629 = vmatpush1.bf16.msra.mxu0 0
    %1630 = vmatprep.subr.bf16.mxu0 0
    %1631 = vmatpush1.bf16.msra.mxu0 0
    %1632 = vmatprep.subr.bf16.mxu0 0
    %1633 = vmatpush1.bf16.msra.mxu0 0
    %1634 = vmatprep.subr.bf16.mxu0 0
    %1635 = vmatpush1.bf16.msra.mxu0 0
    %1636 = vmatprep.subr.bf16.mxu0 0
    %1637 = vmatpush1.bf16.msra.mxu0 0
    %1638 = vmatprep.subr.bf16.mxu0 0
    %1639 = vmatpush1.bf16.msra.mxu0 0
    %1640 = vmatprep.subr.bf16.mxu0 0
    %1641 = vmatpush1.bf16.msra.mxu0 0
    %1642 = vmatprep.subr.bf16.mxu0 0
    %1643 = vmatpush1.bf16.msra.mxu0 0
    %1644 = vmatprep.subr.bf16.mxu0 0
    %1645 = vmatpush1.bf16.msra.mxu0 0
    %1646 = vmatprep.mubr.bf16.mxu0 0
    %1647 = vmatmul.mubr.bf16.gmra.mrb[0].mxu0 %v283
    %v1648 = vpop.f32.mrb[0].mxu0
    %v1649 = vadd.f32 0.0, %v1648
    %v1650 = vpop.f32.mrb[0].mxu0
    %v1651 = vpop.f32.mrb[0].mxu0
    %v1652 = vadd.f32 0.0, %v1651
    %v1653 = vpop.f32.mrb[0].mxu0
    %1654 = vmatprep.mubr.bf16.mxu0 0
    %1655 = vmatmul.mubr.bf16.gmra.mrb[0].mxu0 %v286
    %v1656 = vpop.f32.mrb[0].mxu0
    %v1657 = vadd.f32 0.0, %v1656
    %v1658 = vpop.f32.mrb[0].mxu0
    %v1659 = vpop.f32.mrb[0].mxu0
    %v1660 = vadd.f32 0.0, %v1659
    %v1661 = vpop.f32.mrb[0].mxu0
    %1662 = vdwg.mxu0
    %vm1663 = vcmp.gt.f32.partialorder %v1649, 0.0
    %vm1664 = vcmp.gt.f32.partialorder %v1652, 0.0
    %vm1665 = vcmp.gt.f32.partialorder %v1657, 0.0
    %vm1666 = vcmp.gt.f32.partialorder %v1660, 0.0
    %v1667 = vsel %vm1663, %v1649, 1.0
    %v1668 = vsel %vm1664, %v1652, 1.0
    %v1669 = vsel %vm1665, %v1657, 1.0
    %v1670 = vsel %vm1666, %v1660, 1.0
    %v1671 = vrcp.pop %v1667
    %v1672 = vrcp.pop %v1668
    %v1673 = vrcp.pop %v1669
    %v1674 = vrcp.pop %v1670
    %1679 = vrot.lane.b32.xlu0 %v1671, 96
    %v1680 = vpop.permute.xlu0 %1679
    %1681 = vrot.lane.b32.xlu0 %v1672, 96
    %v1682 = vpop.permute.xlu0 %1681
    %1683 = vrot.lane.b32.xlu0 %v1673, 96
    %v1684 = vpop.permute.xlu0 %1683
    %1685 = vrot.lane.b32.xlu0 %v1674, 96
    %v1686 = vpop.permute.xlu0 %1685
    %v1691 = vmul.f32 %v1649, %v1680
    %v1692 = vmul.f32 %v1652, %v1682
    %v1693 = vmul.f32 %v1657, %v1684
    %v1694 = vmul.f32 %v1660, %v1686
    %1699 = vrot.lane.b32.xlu0 %v1691, 32
    %v1700 = vpop.permute.xlu0 %1699
    %1701 = vrot.lane.b32.xlu0 %v1692, 32
    %v1702 = vpop.permute.xlu0 %1701
    %1703 = vrot.lane.b32.xlu0 %v1693, 32
    %v1704 = vpop.permute.xlu0 %1703
    %1705 = vrot.lane.b32.xlu0 %v1694, 32
    %v1706 = vpop.permute.xlu0 %1705
    %v1711 = vsel %vm1663, %v1700, 0.0
    %v1712 = vsel %vm1664, %v1702, 0.0
    %v1713 = vsel %vm1665, %v1704, 0.0
    %v1714 = vsel %vm1666, %v1706, 0.0
    %1719 = vrot.lane.b32.xlu0 %v1711, 96
    %v1720 = vpop.permute.xlu0 %1719
    %1721 = vrot.lane.b32.xlu0 %v1712, 96
    %v1722 = vpop.permute.xlu0 %1721
    %1723 = vrot.lane.b32.xlu0 %v1713, 96
    %v1724 = vpop.permute.xlu0 %1723
    %1725 = vrot.lane.b32.xlu0 %v1714, 96
    %v1726 = vpop.permute.xlu0 %1725
    %v1731 = vadd.f32 %v1430, %v1720
    %v1732 = vadd.f32 %v1431, %v1722
    %v1733 = vadd.f32 %v1432, %v1724
    %v1734 = vadd.f32 %v1433, %v1726
    %s1735 = scalar_lea.vmem %s4, 64
    %v1736 = vld [vmem:[%s1735] sm:$0xff]
    %v1737 = vld [vmem:[%s1735 + $0x8] sm:$0xff]
    %v1738 = vld [vmem:[%s1735 + $0x10] sm:$0xff]
    %v1739 = vld [vmem:[%s1735 + $0x18] sm:$0xff]
    %v1740 = vlaneseq
    %v1741 = vshrl.u32 %v1740, 7
    %v1742 = vsub.s32 6, %v1741
    %v1743 = vrot.slane %v56, %v1742
    %v1745 = vsel %vm80, %v1731, 0
    %v1748 = vsel %vm80, %v1732, 0
    %v1751 = vsel %vm80, %v1733, 0
    %v1754 = vsel %vm80, %v1734, 0
    %1756 = vmatprep.subr.mxu0 0.0
    %1757 = vmatpush1.msra.mxu0 %v1736
    %1758 = vmatprep.subr.mxu0 0.0
    %1759 = vmatpush1.msra.mxu0 %v1737
    %1760 = vmatprep.subr.mxu0 0.0
    %1761 = vmatpush1.msra.mxu0 %v1738
    %1762 = vmatprep.subr.mxu0 0.0
    %1763 = vmatpush1.msra.mxu0 %v1739
    %1764 = vmatprep.subr.mxu0 0.0
    %1765 = vmatpush1.msra.mxu0 0.0
    %1766 = vmatprep.subr.mxu0 0.0
    %1767 = vmatpush1.msra.mxu0 0.0
    %1768 = vmatprep.subr.mxu0 0.0
    %1769 = vmatpush1.msra.mxu0 0.0
    %1770 = vmatprep.subr.mxu0 0.0
    %1771 = vmatpush1.msra.mxu0 0.0
    %1772 = vmatprep.subr.mxu0 0.0
    %1773 = vmatpush1.msra.mxu0 0.0
    %1774 = vmatprep.subr.mxu0 0.0
    %1775 = vmatpush1.msra.mxu0 0.0
    %1776 = vmatprep.subr.mxu0 0.0
    %1777 = vmatpush1.msra.mxu0 0.0
    %1778 = vmatprep.subr.mxu0 0.0
    %1779 = vmatpush1.msra.mxu0 0.0
    %1780 = vmatprep.subr.mxu0 0.0
    %1781 = vmatpush1.msra.mxu0 0.0
    %1782 = vmatprep.subr.mxu0 0.0
    %1783 = vmatpush1.msra.mxu0 0.0
    %1784 = vmatprep.subr.mxu0 0.0
    %1785 = vmatpush1.msra.mxu0 0.0
    %1786 = vmatprep.subr.mxu0 0.0
    %1787 = vmatpush1.msra.mxu0 0.0
    %1788 = vmatprep.subr.mxu0 0.0
    %1789 = vmatpush1.msra.mxu0 0.0
    %1790 = vmatprep.subr.mxu0 0.0
    %1791 = vmatpush1.msra.mxu0 0.0
    %1792 = vmatprep.subr.mxu0 0.0
    %1793 = vmatpush1.msra.mxu0 0.0
    %1794 = vmatprep.subr.mxu0 0.0
    %1795 = vmatpush1.msra.mxu0 0.0
    %1796 = vmatprep.subr.mxu0 0.0
    %1797 = vmatpush1.msra.mxu0 0.0
    %1798 = vmatprep.subr.mxu0 0.0
    %1799 = vmatpush1.msra.mxu0 0.0
    %1800 = vmatprep.subr.mxu0 0.0
    %1801 = vmatpush1.msra.mxu0 0.0
    %1802 = vmatprep.subr.mxu0 0.0
    %1803 = vmatpush1.msra.mxu0 0.0
    %1804 = vmatprep.subr.mxu0 0.0
    %1805 = vmatpush1.msra.mxu0 0.0
    %1806 = vmatprep.subr.mxu0 0.0
    %1807 = vmatpush1.msra.mxu0 0.0
    %1808 = vmatprep.subr.mxu0 0.0
    %1809 = vmatpush1.msra.mxu0 0.0
    %1810 = vmatprep.subr.mxu0 0.0
    %1811 = vmatpush1.msra.mxu0 0.0
    %1812 = vmatprep.subr.mxu0 0.0
    %1813 = vmatpush1.msra.mxu0 0.0
    %1814 = vmatprep.subr.mxu0 0.0
    %1815 = vmatpush1.msra.mxu0 0.0
    %1816 = vmatprep.subr.mxu0 0.0
    %1817 = vmatpush1.msra.mxu0 0.0
    %1818 = vmatprep.subr.mxu0 0.0
    %1819 = vmatpush1.msra.mxu0 0.0
    %1820 = vmatprep.mubr.f32.mxu0 0.0
    %1821 = vmatmul.mubr.f32.gmra.mrb[0].mxu0 %v1745
    %v1822 = vpop.f32.mrb[0].mxu0
    %v1823 = vadd.f32 %v1743, %v1822
    %v1824 = vpop.f32.mrb[0].mxu0
    %1825 = vmatprep.mubr.f32.mxu0 0.0
    %1826 = vmatmul.mubr.f32.gmra.mrb[0].mxu0 %v1748
    %v1827 = vpop.f32.mrb[0].mxu0
    %v1828 = vadd.f32 %v1743, %v1827
    %v1829 = vpop.f32.mrb[0].mxu0
    %1830 = vmatprep.mubr.f32.mxu0 0.0
    %1831 = vmatmul.mubr.f32.gmra.mrb[0].mxu0 %v1751
    %v1832 = vpop.f32.mrb[0].mxu0
    %v1833 = vadd.f32 %v1743, %v1832
    %v1834 = vpop.f32.mrb[0].mxu0
    %1835 = vmatprep.mubr.f32.mxu0 0.0
    %1836 = vmatmul.mubr.f32.gmra.mrb[0].mxu0 %v1754
    %v1837 = vpop.f32.mrb[0].mxu0
    %v1838 = vadd.f32 %v1743, %v1837
    %v1839 = vpop.f32.mrb[0].mxu0
    %1840 = vdwg.mxu0
    %v1841 = vsel %vm281, %v1823, 0.0
    %1842 = vadd.xlane.f32.xlu0 %v1841
    %v1843 = vpop.xlane.xlu0 %1842
    %v1844 = vsel %vm281, %v1828, 0.0
    %1845 = vadd.xlane.f32.xlu0 %v1844
    %v1846 = vpop.xlane.xlu0 %1845
    %v1847 = vsel %vm281, %v1833, 0.0
    %1848 = vadd.xlane.f32.xlu0 %v1847
    %v1849 = vpop.xlane.xlu0 %1848
    %v1850 = vsel %vm281, %v1838, 0.0
    %1851 = vadd.xlane.f32.xlu0 %v1850
    %v1852 = vpop.xlane.xlu0 %1851
    %v1853 = vmul.f32 %v1843, %v526
    %v1854 = vmul.f32 %v1846, %v526
    %v1855 = vmul.f32 %v1849, %v526
    %v1856 = vmul.f32 %v1852, %v526
    %v1857 = vsub.f32 %v1823, %v1853
    %v1858 = vsub.f32 %v1828, %v1854
    %v1859 = vsub.f32 %v1833, %v1855
    %v1860 = vsub.f32 %v1838, %v1856
    %v1861 = vmul.f32 %v1857, %v1857
    %v1862 = vmul.f32 %v1858, %v1858
    %v1863 = vmul.f32 %v1859, %v1859
    %v1864 = vmul.f32 %v1860, %v1860
    %v1865 = vsel %vm281, %v1861, 0.0
    %1866 = vadd.xlane.f32.xlu0 %v1865
    %v1867 = vpop.xlane.xlu0 %1866
    %v1868 = vsel %vm281, %v1862, 0.0
    %1869 = vadd.xlane.f32.xlu0 %v1868
    %v1870 = vpop.xlane.xlu0 %1869
    %v1871 = vsel %vm281, %v1863, 0.0
    %1872 = vadd.xlane.f32.xlu0 %v1871
    %v1873 = vpop.xlane.xlu0 %1872
    %v1874 = vsel %vm281, %v1864, 0.0
    %1875 = vadd.xlane.f32.xlu0 %v1874
    %v1876 = vpop.xlane.xlu0 %1875
    %v1877 = vmul.f32 %v1867, %v526
    %v1878 = vmul.f32 %v1870, %v526
    %v1879 = vmul.f32 %v1873, %v526
    %v1880 = vmul.f32 %v1876, %v526
    %v1881 = vadd.f32 %v1877, 1e-05
    %v1882 = vadd.f32 %v1878, 1e-05
    %v1883 = vadd.f32 %v1879, 1e-05
    %v1884 = vadd.f32 %v1880, 1e-05
    %v1885 = vrsqrt.pop %v1881
    %v1886 = vrsqrt.pop %v1882
    %v1887 = vrsqrt.pop %v1883
    %v1888 = vrsqrt.pop %v1884
    %v1889 = vmul.f32 %v1857, %v1885
    %v1890 = vmul.f32 %v1858, %v1886
    %v1891 = vmul.f32 %v1859, %v1887
    %v1892 = vmul.f32 %v1860, %v1888
    %v1893 = vlaneseq
    %v1894 = vshrl.u32 %v1893, 7
    %v1895 = vsub.s32 7, %v1894
    %v1896 = vrot.slane %v56, %v1895
    %v1897 = vmul.f32 %v1889, %v1896
    %v1898 = vmul.f32 %v1890, %v1896
    %v1899 = vmul.f32 %v1891, %v1896
    %v1900 = vmul.f32 %v1892, %v1896
    %v1901 = vlaneseq
    %v1902 = vshrl.u32 %v1901, 7
    %v1903 = vsub.s32 0, %v1902
    %v1904 = vrot.slane %v57, %v1903
    %v1905 = vadd.f32 %v1897, %v1904
    %v1906 = vadd.f32 %v1898, %v1904
    %v1907 = vadd.f32 %v1899, %v1904
    %v1908 = vadd.f32 %v1900, %v1904
    %v1909 = vmax.f32 %v1905, 0.0
    %v1910 = vmax.f32 %v1906, 0.0
    %v1911 = vmax.f32 %v1907, 0.0
    %v1912 = vmax.f32 %v1908, 0.0
    %s1913 = scalar_lea.vmem %s5, 128
    %v1914 = vld [vmem:[%s1913] sm:$0xff]
    %v1915 = vld [vmem:[%s1913 + $0x8] sm:$0xff]
    %v1916 = vld [vmem:[%s1913 + $0x10] sm:$0xff]
    %v1917 = vld [vmem:[%s1913 + $0x18] sm:$0xff]
    %v1918 = vld [vmem:[%s1913 + $0x20] sm:$0xff]
    %v1919 = vld [vmem:[%s1913 + $0x28] sm:$0xff]
    %v1920 = vld [vmem:[%s1913 + $0x30] sm:$0xff]
    %v1921 = vld [vmem:[%s1913 + $0x38] sm:$0xff]
    %v1922 = vlaneseq
    %v1923 = vshrl.u32 %v1922, 7
    %v1924 = vsub.s32 1, %v1923
    %v1925 = vrot.slane %v57, %v1924
    %v1927 = vsel %vm281, %v1909, 0
    %v1930 = vsel %vm281, %v1910, 0
    %v1933 = vsel %vm281, %v1911, 0
    %v1936 = vsel %vm281, %v1912, 0
    %1938 = vmatprep.subr.mxu0 0.0
    %1939 = vmatpush1.msra.mxu0 %v1914
    %1940 = vmatprep.subr.mxu0 0.0
    %1941 = vmatpush1.msra.mxu0 %v1915
    %1942 = vmatprep.subr.mxu0 0.0
    %1943 = vmatpush1.msra.mxu0 %v1916
    %1944 = vmatprep.subr.mxu0 0.0
    %1945 = vmatpush1.msra.mxu0 %v1917
    %1946 = vmatprep.subr.mxu0 0.0
    %1947 = vmatpush1.msra.mxu0 %v1918
    %1948 = vmatprep.subr.mxu0 0.0
    %1949 = vmatpush1.msra.mxu0 %v1919
    %1950 = vmatprep.subr.mxu0 0.0
    %1951 = vmatpush1.msra.mxu0 %v1920
    %1952 = vmatprep.subr.mxu0 0.0
    %1953 = vmatpush1.msra.mxu0 %v1921
    %1954 = vmatprep.subr.mxu0 0.0
    %1955 = vmatpush1.msra.mxu0 0.0
    %1956 = vmatprep.subr.mxu0 0.0
    %1957 = vmatpush1.msra.mxu0 0.0
    %1958 = vmatprep.subr.mxu0 0.0
    %1959 = vmatpush1.msra.mxu0 0.0
    %1960 = vmatprep.subr.mxu0 0.0
    %1961 = vmatpush1.msra.mxu0 0.0
    %1962 = vmatprep.subr.mxu0 0.0
    %1963 = vmatpush1.msra.mxu0 0.0
    %1964 = vmatprep.subr.mxu0 0.0
    %1965 = vmatpush1.msra.mxu0 0.0
    %1966 = vmatprep.subr.mxu0 0.0
    %1967 = vmatpush1.msra.mxu0 0.0
    %1968 = vmatprep.subr.mxu0 0.0
    %1969 = vmatpush1.msra.mxu0 0.0
    %1970 = vmatprep.subr.mxu0 0.0
    %1971 = vmatpush1.msra.mxu0 0.0
    %1972 = vmatprep.subr.mxu0 0.0
    %1973 = vmatpush1.msra.mxu0 0.0
    %1974 = vmatprep.subr.mxu0 0.0
    %1975 = vmatpush1.msra.mxu0 0.0
    %1976 = vmatprep.subr.mxu0 0.0
    %1977 = vmatpush1.msra.mxu0 0.0
    %1978 = vmatprep.subr.mxu0 0.0
    %1979 = vmatpush1.msra.mxu0 0.0
    %1980 = vmatprep.subr.mxu0 0.0
    %1981 = vmatpush1.msra.mxu0 0.0
    %1982 = vmatprep.subr.mxu0 0.0
    %1983 = vmatpush1.msra.mxu0 0.0
    %1984 = vmatprep.subr.mxu0 0.0
    %1985 = vmatpush1.msra.mxu0 0.0
    %1986 = vmatprep.subr.mxu0 0.0
    %1987 = vmatpush1.msra.mxu0 0.0
    %1988 = vmatprep.subr.mxu0 0.0
    %1989 = vmatpush1.msra.mxu0 0.0
    %1990 = vmatprep.subr.mxu0 0.0
    %1991 = vmatpush1.msra.mxu0 0.0
    %1992 = vmatprep.subr.mxu0 0.0
    %1993 = vmatpush1.msra.mxu0 0.0
    %1994 = vmatprep.subr.mxu0 0.0
    %1995 = vmatpush1.msra.mxu0 0.0
    %1996 = vmatprep.subr.mxu0 0.0
    %1997 = vmatpush1.msra.mxu0 0.0
    %1998 = vmatprep.subr.mxu0 0.0
    %1999 = vmatpush1.msra.mxu0 0.0
    %2000 = vmatprep.subr.mxu0 0.0
    %2001 = vmatpush1.msra.mxu0 0.0
    %2002 = vmatprep.mubr.f32.mxu0 0.0
    %2003 = vmatmul.mubr.f32.gmra.mrb[0].mxu0 %v1927
    %v2004 = vpop.f32.mrb[0].mxu0
    %v2005 = vadd.f32 %v1925, %v2004
    %v2006 = vpop.f32.mrb[0].mxu0
    %2007 = vmatprep.mubr.f32.mxu0 0.0
    %2008 = vmatmul.mubr.f32.gmra.mrb[0].mxu0 %v1930
    %v2009 = vpop.f32.mrb[0].mxu0
    %v2010 = vadd.f32 %v1925, %v2009
    %v2011 = vpop.f32.mrb[0].mxu0
    %2012 = vmatprep.mubr.f32.mxu0 0.0
    %2013 = vmatmul.mubr.f32.gmra.mrb[0].mxu0 %v1933
    %v2014 = vpop.f32.mrb[0].mxu0
    %v2015 = vadd.f32 %v1925, %v2014
    %v2016 = vpop.f32.mrb[0].mxu0
    %2017 = vmatprep.mubr.f32.mxu0 0.0
    %2018 = vmatmul.mubr.f32.gmra.mrb[0].mxu0 %v1936
    %v2019 = vpop.f32.mrb[0].mxu0
    %v2020 = vadd.f32 %v1925, %v2019
    %v2021 = vpop.f32.mrb[0].mxu0
    %2022 = vdwg.mxu0
    %v2023 = vadd.f32 %v2005, %v1358
    %v2024 = vadd.f32 %v2010, %v1359
    %v2025 = vadd.f32 %v2015, %v1360
    %v2026 = vadd.f32 %v2020, %v1361
    %v2027 = vsel %vm80, %v2023, 0.0
    %2028 = vadd.xlane.f32.xlu0 %v2027
    %v2029 = vpop.xlane.xlu0 %2028
    %v2030 = vsel %vm80, %v2024, 0.0
    %2031 = vadd.xlane.f32.xlu0 %v2030
    %v2032 = vpop.xlane.xlu0 %2031
    %v2033 = vsel %vm80, %v2025, 0.0
    %2034 = vadd.xlane.f32.xlu0 %v2033
    %v2035 = vpop.xlane.xlu0 %2034
    %v2036 = vsel %vm80, %v2026, 0.0
    %2037 = vadd.xlane.f32.xlu0 %v2036
    %v2038 = vpop.xlane.xlu0 %2037
    %v2039 = vmul.f32 %v2029, %v708
    %v2040 = vmul.f32 %v2032, %v708
    %v2041 = vmul.f32 %v2035, %v708
    %v2042 = vmul.f32 %v2038, %v708
    %v2043 = vsub.f32 %v2023, %v2039
    %v2044 = vsub.f32 %v2024, %v2040
    %v2045 = vsub.f32 %v2025, %v2041
    %v2046 = vsub.f32 %v2026, %v2042
    %v2047 = vmul.f32 %v2043, %v2043
    %v2048 = vmul.f32 %v2044, %v2044
    %v2049 = vmul.f32 %v2045, %v2045
    %v2050 = vmul.f32 %v2046, %v2046
    %v2051 = vsel %vm80, %v2047, 0.0
    %2052 = vadd.xlane.f32.xlu0 %v2051
    %v2053 = vpop.xlane.xlu0 %2052
    %v2054 = vsel %vm80, %v2048, 0.0
    %2055 = vadd.xlane.f32.xlu0 %v2054
    %v2056 = vpop.xlane.xlu0 %2055
    %v2057 = vsel %vm80, %v2049, 0.0
    %2058 = vadd.xlane.f32.xlu0 %v2057
    %v2059 = vpop.xlane.xlu0 %2058
    %v2060 = vsel %vm80, %v2050, 0.0
    %2061 = vadd.xlane.f32.xlu0 %v2060
    %v2062 = vpop.xlane.xlu0 %2061
    %v2063 = vmul.f32 %v2053, %v708
    %v2064 = vmul.f32 %v2056, %v708
    %v2065 = vmul.f32 %v2059, %v708
    %v2066 = vmul.f32 %v2062, %v708
    %v2067 = vadd.f32 %v2063, 1e-05
    %v2068 = vadd.f32 %v2064, 1e-05
    %v2069 = vadd.f32 %v2065, 1e-05
    %v2070 = vadd.f32 %v2066, 1e-05
    %v2071 = vrsqrt.pop %v2067
    %v2072 = vrsqrt.pop %v2068
    %v2073 = vrsqrt.pop %v2069
    %v2074 = vrsqrt.pop %v2070
    %v2075 = vmul.f32 %v2043, %v2071
    %v2076 = vmul.f32 %v2044, %v2072
    %v2077 = vmul.f32 %v2045, %v2073
    %v2078 = vmul.f32 %v2046, %v2074
    %v2079 = vlaneseq
    %v2080 = vshrl.u32 %v2079, 7
    %v2081 = vsub.s32 4, %v2080
    %v2082 = vrot.slane %v56, %v2081
    %v2083 = vmul.f32 %v2075, %v2082
    %v2084 = vmul.f32 %v2076, %v2082
    %v2085 = vmul.f32 %v2077, %v2082
    %v2086 = vmul.f32 %v2078, %v2082
    %v2087 = vlaneseq
    %v2088 = vshrl.u32 %v2087, 7
    %v2089 = vsub.s32 5, %v2088
    %v2090 = vrot.slane %v56, %v2089
    %v2091 = vadd.f32 %v2083, %v2090
    %v2092 = vadd.f32 %v2084, %v2090
    %v2093 = vadd.f32 %v2085, %v2090
    %v2094 = vadd.f32 %v2086, %v2090
    %v2095 = vld [vmem:[%s3] sm:$0x3]
    %v2097 = vsel %vm80, %v2095, 0
    %2099 = vmatprep.subr.mxu0 0.0
    %2100 = vmatpush1.msra.mxu0 %v2091
    %2101 = vmatprep.subr.mxu0 0.0
    %2102 = vmatpush1.msra.mxu0 %v2092
    %2103 = vmatprep.subr.mxu0 0.0
    %2104 = vmatpush1.msra.mxu0 %v2093
    %2105 = vmatprep.subr.mxu0 0.0
    %2106 = vmatpush1.msra.mxu0 %v2094
    %2107 = vmatprep.subr.mxu0 0.0
    %2108 = vmatpush1.msra.mxu0 0.0
    %2109 = vmatprep.subr.mxu0 0.0
    %2110 = vmatpush1.msra.mxu0 0.0
    %2111 = vmatprep.subr.mxu0 0.0
    %2112 = vmatpush1.msra.mxu0 0.0
    %2113 = vmatprep.subr.mxu0 0.0
    %2114 = vmatpush1.msra.mxu0 0.0
    %2115 = vmatprep.subr.mxu0 0.0
    %2116 = vmatpush1.msra.mxu0 0.0
    %2117 = vmatprep.subr.mxu0 0.0
    %2118 = vmatpush1.msra.mxu0 0.0
    %2119 = vmatprep.subr.mxu0 0.0
    %2120 = vmatpush1.msra.mxu0 0.0
    %2121 = vmatprep.subr.mxu0 0.0
    %2122 = vmatpush1.msra.mxu0 0.0
    %2123 = vmatprep.subr.mxu0 0.0
    %2124 = vmatpush1.msra.mxu0 0.0
    %2125 = vmatprep.subr.mxu0 0.0
    %2126 = vmatpush1.msra.mxu0 0.0
    %2127 = vmatprep.subr.mxu0 0.0
    %2128 = vmatpush1.msra.mxu0 0.0
    %2129 = vmatprep.subr.mxu0 0.0
    %2130 = vmatpush1.msra.mxu0 0.0
    %2131 = vmatprep.subr.mxu0 0.0
    %2132 = vmatpush1.msra.mxu0 0.0
    %2133 = vmatprep.subr.mxu0 0.0
    %2134 = vmatpush1.msra.mxu0 0.0
    %2135 = vmatprep.subr.mxu0 0.0
    %2136 = vmatpush1.msra.mxu0 0.0
    %2137 = vmatprep.subr.mxu0 0.0
    %2138 = vmatpush1.msra.mxu0 0.0
    %2139 = vmatprep.subr.mxu0 0.0
    %2140 = vmatpush1.msra.mxu0 0.0
    %2141 = vmatprep.subr.mxu0 0.0
    %2142 = vmatpush1.msra.mxu0 0.0
    %2143 = vmatprep.subr.mxu0 0.0
    %2144 = vmatpush1.msra.mxu0 0.0
    %2145 = vmatprep.subr.mxu0 0.0
    %2146 = vmatpush1.msra.mxu0 0.0
    %2147 = vmatprep.subr.mxu0 0.0
    %2148 = vmatpush1.msra.mxu0 0.0
    %2149 = vmatprep.subr.mxu0 0.0
    %2150 = vmatpush1.msra.mxu0 0.0
    %2151 = vmatprep.subr.mxu0 0.0
    %2152 = vmatpush1.msra.mxu0 0.0
    %2153 = vmatprep.subr.mxu0 0.0
    %2154 = vmatpush1.msra.mxu0 0.0
    %2155 = vmatprep.subr.mxu0 0.0
    %2156 = vmatpush1.msra.mxu0 0.0
    %2157 = vmatprep.subr.mxu0 0.0
    %2158 = vmatpush1.msra.mxu0 0.0
    %2159 = vmatprep.subr.mxu0 0.0
    %2160 = vmatpush1.msra.mxu0 0.0
    %2161 = vmatprep.subr.mxu0 0.0
    %2162 = vmatpush1.msra.mxu0 0.0
    %2163 = vmatprep.mubr.f32.mxu0 0.0
    %2164 = vmatmul.mubr.f32.gmra.mrb[0].mxu0 %v2097
    %v2165 = vpop.f32.mrb[0].mxu0
    %v2166 = vadd.f32 0.0, %v2165
    %v2167 = vpop.f32.mrb[0].mxu0
    %2168 = vdwg.mxu0
    %v2169 = vld [vmem:[%s6] sm:$0xff]
    %v2170 = vld [vmem:[%s6 + $0x8] sm:$0xff]
    %v2171 = vld [vmem:[%s6 + $0x10] sm:$0xff]
    %v2172 = vld [vmem:[%s6 + $0x18] sm:$0xff]
    %v2173 = vld [vmem:[%s6 + $0x20] sm:$0x1]
    %v2174 = vlaneseq
    %v2175 = vshrl.u32 %v2174, 7
    %v2176 = vsub.s32 0, %v2175
    %v2177 = vrot.slane %v2173, %v2176
    %v2179 = vsel %vm80, %v2166, 0
    %2181 = vmatprep.subr.mxu0 0.0
    %2182 = vmatpush1.msra.mxu0 %v2169
    %2183 = vmatprep.subr.mxu0 0.0
    %2184 = vmatpush1.msra.mxu0 %v2170
    %2185 = vmatprep.subr.mxu0 0.0
    %2186 = vmatpush1.msra.mxu0 %v2171
    %2187 = vmatprep.subr.mxu0 0.0
    %2188 = vmatpush1.msra.mxu0 %v2172
    %2189 = vmatprep.subr.mxu0 0.0
    %2190 = vmatpush1.msra.mxu0 0.0
    %2191 = vmatprep.subr.mxu0 0.0
    %2192 = vmatpush1.msra.mxu0 0.0
    %2193 = vmatprep.subr.mxu0 0.0
    %2194 = vmatpush1.msra.mxu0 0.0
    %2195 = vmatprep.subr.mxu0 0.0
    %2196 = vmatpush1.msra.mxu0 0.0
    %2197 = vmatprep.subr.mxu0 0.0
    %2198 = vmatpush1.msra.mxu0 0.0
    %2199 = vmatprep.subr.mxu0 0.0
    %2200 = vmatpush1.msra.mxu0 0.0
    %2201 = vmatprep.subr.mxu0 0.0
    %2202 = vmatpush1.msra.mxu0 0.0
    %2203 = vmatprep.subr.mxu0 0.0
    %2204 = vmatpush1.msra.mxu0 0.0
    %2205 = vmatprep.subr.mxu0 0.0
    %2206 = vmatpush1.msra.mxu0 0.0
    %2207 = vmatprep.subr.mxu0 0.0
    %2208 = vmatpush1.msra.mxu0 0.0
    %2209 = vmatprep.subr.mxu0 0.0
    %2210 = vmatpush1.msra.mxu0 0.0
    %2211 = vmatprep.subr.mxu0 0.0
    %2212 = vmatpush1.msra.mxu0 0.0
    %2213 = vmatprep.subr.mxu0 0.0
    %2214 = vmatpush1.msra.mxu0 0.0
    %2215 = vmatprep.subr.mxu0 0.0
    %2216 = vmatpush1.msra.mxu0 0.0
    %2217 = vmatprep.subr.mxu0 0.0
    %2218 = vmatpush1.msra.mxu0 0.0
    %2219 = vmatprep.subr.mxu0 0.0
    %2220 = vmatpush1.msra.mxu0 0.0
    %2221 = vmatprep.subr.mxu0 0.0
    %2222 = vmatpush1.msra.mxu0 0.0
    %2223 = vmatprep.subr.mxu0 0.0
    %2224 = vmatpush1.msra.mxu0 0.0
    %2225 = vmatprep.subr.mxu0 0.0
    %2226 = vmatpush1.msra.mxu0 0.0
    %2227 = vmatprep.subr.mxu0 0.0
    %2228 = vmatpush1.msra.mxu0 0.0
    %2229 = vmatprep.subr.mxu0 0.0
    %2230 = vmatpush1.msra.mxu0 0.0
    %2231 = vmatprep.subr.mxu0 0.0
    %2232 = vmatpush1.msra.mxu0 0.0
    %2233 = vmatprep.subr.mxu0 0.0
    %2234 = vmatpush1.msra.mxu0 0.0
    %2235 = vmatprep.subr.mxu0 0.0
    %2236 = vmatpush1.msra.mxu0 0.0
    %2237 = vmatprep.subr.mxu0 0.0
    %2238 = vmatpush1.msra.mxu0 0.0
    %2239 = vmatprep.subr.mxu0 0.0
    %2240 = vmatpush1.msra.mxu0 0.0
    %2241 = vmatprep.subr.mxu0 0.0
    %2242 = vmatpush1.msra.mxu0 0.0
    %2243 = vmatprep.subr.mxu0 0.0
    %2244 = vmatpush1.msra.mxu0 0.0
    %2245 = vmatprep.mubr.f32.mxu0 0.0
    %2246 = vmatmul.mubr.f32.gmra.mrb[0].mxu0 %v2179
    %v2247 = vpop.f32.mrb[0].mxu0
    %v2248 = vadd.f32 %v2177, %v2247
    %v2249 = vpop.f32.mrb[0].mxu0
    %2250 = vdwg.mxu0
    %2251 = vst [vmem:[#allocation2] sm:$0x3] %v2248
    // Predicated region
    $region34: #{tpu_custom_call.1} parent=1 // pred_check
      _
    $region35: #{tpu_custom_call.1} parent=1 // pred_check_branch
      %2253 = sbr.rel (0) target = $region37
    $region36: #{tpu_custom_call.1} parent=1 // pred_region
      %s2255 = ssub.s32 32, 32
      %2256 = vsyncadd [#allocation3], %s2255
      %s2258 = sshll.u32 [#allocation2], 4
      %s2259 = int_to_ptr.vmem [resolvable:$true] %s2258
      %2261 = dma.vmem_to_hbm [thread:$0]  %s2259, 32, %s8, [#allocation3]
    $region37: #{tpu_custom_call.1} parent=1 // pred_fallthru
      _
    // Predicated region
    $region38: #{tpu_custom_call.1} parent=1 // pred_check
      _
    $region39: #{tpu_custom_call.1} parent=1 // pred_check_branch
      %2263 = sbr.rel (0) target = $region41
    $region40: #{tpu_custom_call.1} parent=1 // pred_region
      %2264 = dma.done [#allocation3], 32
    $region41: #{tpu_custom_call.1} parent=1 // pred_fallthru
      _
    %2265 = vsyncpa [#allocation3], 1

</llo_original>
